<compile_context>
chip_gen: v7x
topology: tpu7x:2x2x1
jax: 0.10.0
libtpu: 0.0.40
codegen_flags: <defaults>
</compile_context>

<pallas_src>
import jax
import jax.numpy as jnp
from jax.experimental import pallas as pl
from jax.experimental.pallas import tpu as pltpu


# ---------------------------------------------------------------------------
# Static model configuration
# ---------------------------------------------------------------------------
B = 2
H = W = 16
C_IN = 4
C1 = 8                        # conv1 out channels
C2 = 16                       # conv2 out channels
KH = KW = 3
PAD = 1
STRIDE2 = 2                   # conv2 stride
HID = 32                      # head hidden width
LATENT = 8
OUT_DIM = LATENT + 3 + 1 + 4  # 16
QUAT_START = LATENT + 3 + 1   # 12
H2 = (H + 2 * PAD - KH) // STRIDE2 + 1   # 8
W2 = (W + 2 * PAD - KW) // STRIDE2 + 1   # 8

M = B * H * W                 # 512 — flat spatial size, mapped to the LANE axis everywhere
SHIFT_PAD = W + 1             # 17  — max |lane shift| of a 3x3 tap
K1 = KH * KW * C_IN + 1       # 37  — conv1 contraction depth (+1 ones-row carries the bias)
K2 = KH * KW * C1 + 1         # 73  — conv2 contraction depth (+1 ones-row carries the bias)

W_BITS = (W - 1).bit_length()        # 4
HW_BITS = (H * W - 1).bit_length()   # 8
assert (1 << W_BITS) == W and (1 << HW_BITS) == H * W

# Row layout of the single packed parameter slab P[P_ROWS, P_COLS] (one DMA for all params).
ROW_W1 = 0                      # rows [0:8)    conv1 weight [C1, K1] (bias in col K1-1)
ROW_W2 = ROW_W1 + C1            # rows [8:24)   conv2 weight [C2, K2] (bias in col K2-1)
ROW_FC1 = ROW_W2 + C2           # rows [24:40)  fc1 weight  [C2, HID]
ROW_FC2 = ROW_FC1 + C2          # rows [40:72)  fc2 weight  [HID, HID]
ROW_OUT = ROW_FC2 + HID         # rows [72:104) out weight  [HID, OUT_DIM]
ROW_FC1B = ROW_OUT + HID        # row 104       fc1 bias    [1, HID]
ROW_FC2B = ROW_FC1B + 1         # row 105       fc2 bias    [1, HID]
ROW_OUTB = ROW_FC2B + 1         # row 106       out bias    [1, OUT_DIM]
P_ROWS = ((ROW_OUTB + 1 + 7) // 8) * 8   # 112
P_COLS = 128


# ---------------------------------------------------------------------------
# Fused Pallas kernel: whole forward pass, every activation VMEM/vreg-resident
# ---------------------------------------------------------------------------
def _fused_sdf_pose_kernel(x_ref, p_ref, o_ref, slab1_ref, a1ext_ref, slab2_ref):
    f32 = jnp.float32

    # Flat-lane index decomposition (constants built from iota — no extra HBM inputs).
    col = jax.lax.broadcasted_iota(jnp.int32, (1, M), 1)
    w_idx = col & (W - 1)                       # w = m % W
    h_idx = (col >> W_BITS) & (H - 1)           # h = (m // W) % H

    def tap_mask(di, dj):
        # 1.0 where the shifted pixel (h+di, w+dj) is inside the image, else 0.0.
        hh = h_idx + di
        ww = w_idx + dj
        ok = (hh >= 0) & (hh < H) & (ww >= 0) & (ww < W)
        return jnp.where(ok, 1.0, 0.0)          # [1, M] f32

    ones_row = jnp.ones((1, M), f32)

    # ---- conv1 im2col: 9 lane-shifted windows of the margin-padded input ----------------
    # x_ref is [C_IN, SHIFT_PAD + M + SHIFT_PAD].  A tap (di, dj) at flat position m reads
    # flat position m + di*W + dj of the same image, so each tap is one window load at lane
    # offset SHIFT_PAD + s, masked where the tap leaves the image.
    for t in range(KH * KW):
        di, dj = t // KW - 1, t % KW - 1
        s = di * W + dj
        win = x_ref[:, SHIFT_PAD + s:SHIFT_PAD + s + M]           # [C_IN, M]
        slab1_ref[t * C_IN:(t + 1) * C_IN, :] = win * tap_mask(di, dj)
    slab1_ref[KH * KW * C_IN:K1, :] = ones_row                    # bias row

    # ---- conv1: ONE MXU push, K = 37, lane-dense [C1, M] activation ---------------------
    a1 = jnp.maximum(
        jnp.dot(p_ref[ROW_W1:ROW_W1 + C1, 0:K1], slab1_ref[...],
                preferred_element_type=f32),
        0.0)                                                      # [C1, M]

    # ---- stage a1 into a lane-extended scratch so conv2 reuses the window trick ---------
    # Zero only the two 17-lane shift margins — no full-slab zero fill.
    a1ext_ref[:, 0:SHIFT_PAD] = jnp.zeros((C1, SHIFT_PAD), f32)
    a1ext_ref[:, SHIFT_PAD + M:2 * SHIFT_PAD + M] = jnp.zeros((C1, SHIFT_PAD), f32)
    a1ext_ref[:, SHIFT_PAD:SHIFT_PAD + M] = a1

    # ---- conv2 im2col + ONE MXU push, K = 73 --------------------------------------------
    for t in range(KH * KW):
        di, dj = t // KW - 1, t % KW - 1
        s = di * W + dj
        win = a1ext_ref[:, SHIFT_PAD + s:SHIFT_PAD + s + M]       # [C1, M]
        slab2_ref[t * C1:(t + 1) * C1, :] = win * tap_mask(di, dj)
    slab2_ref[KH * KW * C1:K2, :] = ones_row                      # bias row

    a2 = jnp.maximum(
        jnp.dot(p_ref[ROW_W2:ROW_W2 + C2, 0:K2], slab2_ref[...],
                preferred_element_type=f32),
        0.0)                                                      # [C2, M]

    # ---- stride-2 subsample + global average pool as one tiny contraction ---------------
    # psel[b, m] = 1/(H2*W2) iff m belongs to batch b and both h and w are even.
    colB = jax.lax.broadcasted_iota(jnp.int32, (B, M), 1)
    rowB = jax.lax.broadcasted_iota(jnp.int32, (B, M), 0)
    hB = (colB >> W_BITS) & (H - 1)
    wB = colB & (W - 1)
    bB = colB >> HW_BITS
    sel = (bB == rowB) & ((hB & 1) == 0) & ((wB & 1) == 0)
    psel = jnp.where(sel, 1.0 / (H2 * W2), 0.0)                   # [B, M]
    feat = jax.lax.dot_general(psel, a2, (((1,), (1,)), ((), ())),
                               preferred_element_type=f32)        # [B, C2]

    # ---- head MLP (all weights sliced statically from the single packed slab) -----------
    h1 = jnp.maximum(
        jnp.dot(feat, p_ref[ROW_FC1:ROW_FC1 + C2, 0:HID], preferred_element_type=f32)
        + p_ref[ROW_FC1B:ROW_FC1B + 1, 0:HID],
        0.0)                                                      # [B, HID]
    h2 = jnp.maximum(
        jnp.dot(h1, p_ref[ROW_FC2:ROW_FC2 + HID, 0:HID], preferred_element_type=f32)
        + p_ref[ROW_FC2B:ROW_FC2B + 1, 0:HID],
        0.0)                                                      # [B, HID]
    y = (jnp.dot(h2, p_ref[ROW_OUT:ROW_OUT + HID, 0:OUT_DIM], preferred_element_type=f32)
         + p_ref[ROW_OUTB:ROW_OUTB + 1, 0:OUT_DIM])               # [B, OUT_DIM]

    # ---- quaternion normalization: single rsqrt + static column-slice scaling -----------
    quat = y[:, QUAT_START:OUT_DIM]
    inv = jax.lax.rsqrt(jnp.sum(quat * quat, axis=-1, keepdims=True) + 1e-12)
    o_ref[:, 0:QUAT_START] = y[:, 0:QUAT_START]
    o_ref[:, QUAT_START:OUT_DIM] = quat * inv


# ---------------------------------------------------------------------------
# Wrapper: single gridless pallas_call for the whole network (2 input DMAs)
# ---------------------------------------------------------------------------
_VMEM = pl.BlockSpec(memory_space=pltpu.MemorySpace.VMEM)


def sdf_pose_net_forward(packed_params, x_nchw):
    """Returns (latent, position, scale, unit-quaternion orientation); NCHW input."""
    # Layout plumbing only (XLA, once per call): NCHW -> channel-major flat [C, M] with a
    # SHIFT_PAD-lane zero margin on each side so every 3x3 tap is a plain window load.
    x_cm = jnp.transpose(x_nchw, (1, 0, 2, 3)).astype(jnp.float32).reshape(C_IN, M)
    x_ext = jnp.pad(x_cm, ((0, 0), (SHIFT_PAD, SHIFT_PAD)))

    out = pl.pallas_call(
        _fused_sdf_pose_kernel,
        out_shape=jax.ShapeDtypeStruct((B, OUT_DIM), jnp.float32),
        in_specs=[_VMEM, _VMEM],
        out_specs=_VMEM,
        scratch_shapes=[
            pltpu.VMEM((K1, M), jnp.float32),                     # conv1 im2col slab
            pltpu.VMEM((C1, M + 2 * SHIFT_PAD), jnp.float32),     # lane-extended a1
            pltpu.VMEM((K2, M), jnp.float32),                     # conv2 im2col slab
        ],
    )(x_ext, packed_params)

    latent = out[:, :LATENT]
    position = out[:, LATENT:LATENT + 3]
    scale = out[:, LATENT + 3:QUAT_START]
    orientation = out[:, QUAT_START:OUT_DIM]
    return latent, position, scale, orientation


# ---------------------------------------------------------------------------
# Deterministic parameter initialization + packing (synthetic; no checkpoint)
# ---------------------------------------------------------------------------
def init_params(key):
    """conv weights in im2col layout: conv{1,2}_w[c_out, (kh*3 + kw)*C_in + c_in]."""
    ks = jax.random.split(key, 5)

    def w(k, shape, fan_in):
        return jax.random.normal(k, shape, jnp.float32) / jnp.sqrt(float(fan_in))

    return {
        "conv1_w": w(ks[0], (C1, KH * KW * C_IN), KH * KW * C_IN),
        "conv1_b": jnp.zeros((C1,), jnp.float32),
        "conv2_w": w(ks[1], (C2, KH * KW * C1), KH * KW * C1),
        "conv2_b": jnp.zeros((C2,), jnp.float32),
        "fc1_w": w(ks[2], (C2, HID), C2),
        "fc1_b": jnp.zeros((HID,), jnp.float32),
        "fc2_w": w(ks[3], (HID, HID), HID),
        "fc2_b": jnp.zeros((HID,), jnp.float32),
        # combined output head: 8 latent + 3 position + 1 scale + 4 quaternion
        "out_w": w(ks[4], (HID, OUT_DIM), HID),
        "out_b": jnp.zeros((OUT_DIM,), jnp.float32),
    }


def pack_params(p):
    """Pack every parameter tensor into ONE lane-dense [P_ROWS, 128] f32 slab.

    The conv biases become an extra weight column contracted against a ones-row in the
    im2col slab, so they need no separate column-vector storage.
    """
    P = jnp.zeros((P_ROWS, P_COLS), jnp.float32)
    P = P.at[ROW_W1:ROW_W1 + C1, :K1].set(
        jnp.concatenate([p["conv1_w"], p["conv1_b"][:, None]], axis=1))
    P = P.at[ROW_W2:ROW_W2 + C2, :K2].set(
        jnp.concatenate([p["conv2_w"], p["conv2_b"][:, None]], axis=1))
    P = P.at[ROW_FC1:ROW_FC1 + C2, :HID].set(p["fc1_w"])
    P = P.at[ROW_FC2:ROW_FC2 + HID, :HID].set(p["fc2_w"])
    P = P.at[ROW_OUT:ROW_OUT + HID, :OUT_DIM].set(p["out_w"])
    P = P.at[ROW_FC1B, :HID].set(p["fc1_b"])
    P = P.at[ROW_FC2B, :HID].set(p["fc2_b"])
    P = P.at[ROW_OUTB, :OUT_DIM].set(p["out_b"])
    return P


# ---------------------------------------------------------------------------
# Pure-JAX/XLA reference of the same concrete network (correctness check only)
# ---------------------------------------------------------------------------
def _reference_forward(p, x_nchw):
    hp = jax.lax.Precision.HIGHEST
    w1 = p["conv1_w"].reshape(C1, KH, KW, C_IN).transpose(0, 3, 1, 2)   # OIHW
    w2 = p["conv2_w"].reshape(C2, KH, KW, C1).transpose(0, 3, 1, 2)
    a1 = jax.lax.conv_general_dilated(
        x_nchw.astype(jnp.float32), w1, (1, 1), ((PAD, PAD), (PAD, PAD)),
        dimension_numbers=("NCHW", "OIHW", "NCHW"), precision=hp)
    a1 = jnp.maximum(a1 + p["conv1_b"][None, :, None, None], 0.0)
    a2 = jax.lax.conv_general_dilated(
        a1, w2, (STRIDE2, STRIDE2), ((PAD, PAD), (PAD, PAD)),
        dimension_numbers=("NCHW", "OIHW", "NCHW"), precision=hp)
    a2 = jnp.maximum(a2 + p["conv2_b"][None, :, None, None], 0.0)
    feat = jnp.mean(a2, axis=(2, 3))                                    # global average pool
    h1 = jnp.maximum(jnp.dot(feat, p["fc1_w"], precision=hp) + p["fc1_b"], 0.0)
    h2 = jnp.maximum(jnp.dot(h1, p["fc2_w"], precision=hp) + p["fc2_b"], 0.0)
    y = jnp.dot(h2, p["out_w"], precision=hp) + p["out_b"]
    quat = y[:, QUAT_START:OUT_DIM]
    quat = quat * jax.lax.rsqrt(jnp.sum(quat * quat, axis=-1, keepdims=True) + 1e-12)
    return y[:, :LATENT], y[:, LATENT:LATENT + 3], y[:, LATENT + 3:QUAT_START], quat


if __name__ == "__main__":
    key = jax.random.PRNGKey(0)
    k_par, k_in = jax.random.split(key)

    params = init_params(k_par)
    packed = pack_params(params)                                   # packed once at init
    x = jax.random.normal(k_in, (B, C_IN, H, W), jnp.float32)      # NCHW like PyTorch

    fwd = jax.jit(sdf_pose_net_forward)
    latent, position, scale, orientation = fwd(packed, x)
    jax.block_until_ready((latent, position, scale, orientation))

    assert latent.shape == (B, LATENT)
    assert position.shape == (B, 3)
    assert scale.shape == (B, 1)
    assert orientation.shape == (B, 4)

    # quaternion head must emit unit quaternions
    norms = jnp.linalg.norm(orientation, axis=-1)
    assert bool(jnp.all(jnp.abs(norms - 1.0) < 1e-4)), f"quat norms: {norms}"

    # numerical check against the XLA reference (loose tolerance: the reference runs
    # HIGHEST-precision convs/dots while the kernel uses the MXU f32 path)
    refs = _reference_forward(params, x)
    for name, got, ref in zip(("latent", "position", "scale", "orientation"),
                              (latent, position, scale, orientation), refs):
        ok = bool(jnp.allclose(got, ref, atol=1e-2, rtol=1e-2))
        assert ok, f"{name} mismatch, max|diff|={float(jnp.max(jnp.abs(got - ref))):.3e}"

    print("KERNEL_OK")
</pallas_src>

<mosaic_0001>
module attributes {stable_mosaic.version = 11 : i64} {
  func.func @_fused_sdf_pose_kernel(%arg0: memref<4x546xf32, #tpu.memory_space<vmem>>, %arg1: memref<112x128xf32, #tpu.memory_space<vmem>>, %arg2: memref<2x16xf32, #tpu.memory_space<vmem>>, %arg3: memref<37x512xf32, #tpu.memory_space<vmem>>, %arg4: memref<8x546xf32, #tpu.memory_space<vmem>>, %arg5: memref<73x512xf32, #tpu.memory_space<vmem>>) attributes {dimension_semantics = [], scalar_prefetch = 0 : i64, scratch_operands = 3 : i64, tpu.core_type = #tpu.core_type<tc>} {
    %0 = tpu.iota {dimensions = array<i32: 1>} : vector<1x512xi32>
    %c15_i32 = arith.constant 15 : i32
    %1 = vector.broadcast %c15_i32 : i32 to vector<1x512xi32>
    %2 = arith.andi %0, %1 : vector<1x512xi32>
    %c4_i32 = arith.constant 4 : i32
    %3 = vector.broadcast %c4_i32 : i32 to vector<1x512xi32>
    %4 = arith.shrsi %0, %3 : vector<1x512xi32>
    %c15_i32_0 = arith.constant 15 : i32
    %5 = vector.broadcast %c15_i32_0 : i32 to vector<1x512xi32>
    %6 = arith.andi %4, %5 : vector<1x512xi32>
    %cst = arith.constant 1.000000e+00 : f32
    %7 = vector.broadcast %cst : f32 to vector<1x512xf32>
    %c0 = arith.constant 0 : index
    %c0_1 = arith.constant 0 : index
    %8 = vector.load %arg0[%c0, %c0_1] : memref<4x546xf32, #tpu.memory_space<vmem>>, vector<4x512xf32>
    %c-1_i32 = arith.constant -1 : i32
    %9 = vector.broadcast %c-1_i32 : i32 to vector<1x512xi32>
    %10 = arith.addi %6, %9 : vector<1x512xi32>
    %c-1_i32_2 = arith.constant -1 : i32
    %11 = vector.broadcast %c-1_i32_2 : i32 to vector<1x512xi32>
    %12 = arith.addi %2, %11 : vector<1x512xi32>
    %c0_i32 = arith.constant 0 : i32
    %13 = vector.broadcast %c0_i32 : i32 to vector<1x512xi32>
    %14 = arith.cmpi sge, %10, %13 : vector<1x512xi32>
    %c16_i32 = arith.constant 16 : i32
    %15 = vector.broadcast %c16_i32 : i32 to vector<1x512xi32>
    %16 = arith.cmpi slt, %10, %15 : vector<1x512xi32>
    %17 = arith.andi %14, %16 : vector<1x512xi1>
    %c0_i32_3 = arith.constant 0 : i32
    %18 = vector.broadcast %c0_i32_3 : i32 to vector<1x512xi32>
    %19 = arith.cmpi sge, %12, %18 : vector<1x512xi32>
    %20 = arith.andi %17, %19 : vector<1x512xi1>
    %c16_i32_4 = arith.constant 16 : i32
    %21 = vector.broadcast %c16_i32_4 : i32 to vector<1x512xi32>
    %22 = arith.cmpi slt, %12, %21 : vector<1x512xi32>
    %23 = arith.andi %20, %22 : vector<1x512xi1>
    %cst_5 = arith.constant 1.000000e+00 : f32
    %cst_6 = arith.constant 0.000000e+00 : f32
    %24 = vector.broadcast %cst_5 : f32 to vector<1x512xf32>
    %25 = vector.broadcast %cst_6 : f32 to vector<1x512xf32>
    %26 = arith.select %23, %24, %25 : vector<1x512xi1>, vector<1x512xf32>
    %27 = vector.broadcast %26 : vector<1x512xf32> to vector<4x512xf32>
    %28 = arith.mulf %8, %27 : vector<4x512xf32>
    %c0_7 = arith.constant 0 : index
    %c0_8 = arith.constant 0 : index
    %29 = vector.load %arg3[%c0_7, %c0_8] : memref<37x512xf32, #tpu.memory_space<vmem>>, vector<4x512xf32>
    tpu.vector_store %arg3[%c0_7, %c0_8], %28 {strides = array<i32>} : memref<37x512xf32, #tpu.memory_space<vmem>>, vector<4x512xf32>,
    %c0_9 = arith.constant 0 : index
    %c1 = arith.constant 1 : index
    %30 = vector.load %arg0[%c0_9, %c1] : memref<4x546xf32, #tpu.memory_space<vmem>>, vector<4x512xf32>
    %c-1_i32_10 = arith.constant -1 : i32
    %31 = vector.broadcast %c-1_i32_10 : i32 to vector<1x512xi32>
    %32 = arith.addi %6, %31 : vector<1x512xi32>
    %c0_i32_11 = arith.constant 0 : i32
    %33 = vector.broadcast %c0_i32_11 : i32 to vector<1x512xi32>
    %34 = arith.addi %2, %33 : vector<1x512xi32>
    %c0_i32_12 = arith.constant 0 : i32
    %35 = vector.broadcast %c0_i32_12 : i32 to vector<1x512xi32>
    %36 = arith.cmpi sge, %32, %35 : vector<1x512xi32>
    %c16_i32_13 = arith.constant 16 : i32
    %37 = vector.broadcast %c16_i32_13 : i32 to vector<1x512xi32>
    %38 = arith.cmpi slt, %32, %37 : vector<1x512xi32>
    %39 = arith.andi %36, %38 : vector<1x512xi1>
    %c0_i32_14 = arith.constant 0 : i32
    %40 = vector.broadcast %c0_i32_14 : i32 to vector<1x512xi32>
    %41 = arith.cmpi sge, %34, %40 : vector<1x512xi32>
    %42 = arith.andi %39, %41 : vector<1x512xi1>
    %c16_i32_15 = arith.constant 16 : i32
    %43 = vector.broadcast %c16_i32_15 : i32 to vector<1x512xi32>
    %44 = arith.cmpi slt, %34, %43 : vector<1x512xi32>
    %45 = arith.andi %42, %44 : vector<1x512xi1>
    %cst_16 = arith.constant 1.000000e+00 : f32
    %cst_17 = arith.constant 0.000000e+00 : f32
    %46 = vector.broadcast %cst_16 : f32 to vector<1x512xf32>
    %47 = vector.broadcast %cst_17 : f32 to vector<1x512xf32>
    %48 = arith.select %45, %46, %47 : vector<1x512xi1>, vector<1x512xf32>
    %49 = vector.broadcast %48 : vector<1x512xf32> to vector<4x512xf32>
    %50 = arith.mulf %30, %49 : vector<4x512xf32>
    %c4 = arith.constant 4 : index
    %c0_18 = arith.constant 0 : index
    %51 = vector.load %arg3[%c4, %c0_18] : memref<37x512xf32, #tpu.memory_space<vmem>>, vector<4x512xf32>
    tpu.vector_store %arg3[%c4, %c0_18], %50 {strides = array<i32>} : memref<37x512xf32, #tpu.memory_space<vmem>>, vector<4x512xf32>,
    %c0_19 = arith.constant 0 : index
    %c2 = arith.constant 2 : index
    %52 = vector.load %arg0[%c0_19, %c2] : memref<4x546xf32, #tpu.memory_space<vmem>>, vector<4x512xf32>
    %c-1_i32_20 = arith.constant -1 : i32
    %53 = vector.broadcast %c-1_i32_20 : i32 to vector<1x512xi32>
    %54 = arith.addi %6, %53 : vector<1x512xi32>
    %c1_i32 = arith.constant 1 : i32
    %55 = vector.broadcast %c1_i32 : i32 to vector<1x512xi32>
    %56 = arith.addi %2, %55 : vector<1x512xi32>
    %c0_i32_21 = arith.constant 0 : i32
    %57 = vector.broadcast %c0_i32_21 : i32 to vector<1x512xi32>
    %58 = arith.cmpi sge, %54, %57 : vector<1x512xi32>
    %c16_i32_22 = arith.constant 16 : i32
    %59 = vector.broadcast %c16_i32_22 : i32 to vector<1x512xi32>
    %60 = arith.cmpi slt, %54, %59 : vector<1x512xi32>
    %61 = arith.andi %58, %60 : vector<1x512xi1>
    %c0_i32_23 = arith.constant 0 : i32
    %62 = vector.broadcast %c0_i32_23 : i32 to vector<1x512xi32>
    %63 = arith.cmpi sge, %56, %62 : vector<1x512xi32>
    %64 = arith.andi %61, %63 : vector<1x512xi1>
    %c16_i32_24 = arith.constant 16 : i32
    %65 = vector.broadcast %c16_i32_24 : i32 to vector<1x512xi32>
    %66 = arith.cmpi slt, %56, %65 : vector<1x512xi32>
    %67 = arith.andi %64, %66 : vector<1x512xi1>
    %cst_25 = arith.constant 1.000000e+00 : f32
    %cst_26 = arith.constant 0.000000e+00 : f32
    %68 = vector.broadcast %cst_25 : f32 to vector<1x512xf32>
    %69 = vector.broadcast %cst_26 : f32 to vector<1x512xf32>
    %70 = arith.select %67, %68, %69 : vector<1x512xi1>, vector<1x512xf32>
    %71 = vector.broadcast %70 : vector<1x512xf32> to vector<4x512xf32>
    %72 = arith.mulf %52, %71 : vector<4x512xf32>
    %c8 = arith.constant 8 : index
    %c0_27 = arith.constant 0 : index
    %73 = vector.load %arg3[%c8, %c0_27] : memref<37x512xf32, #tpu.memory_space<vmem>>, vector<4x512xf32>
    tpu.vector_store %arg3[%c8, %c0_27], %72 {strides = array<i32>} : memref<37x512xf32, #tpu.memory_space<vmem>>, vector<4x512xf32>,
    %c0_28 = arith.constant 0 : index
    %c16 = arith.constant 16 : index
    %74 = vector.load %arg0[%c0_28, %c16] : memref<4x546xf32, #tpu.memory_space<vmem>>, vector<4x512xf32>
    %c0_i32_29 = arith.constant 0 : i32
    %75 = vector.broadcast %c0_i32_29 : i32 to vector<1x512xi32>
    %76 = arith.addi %6, %75 : vector<1x512xi32>
    %c-1_i32_30 = arith.constant -1 : i32
    %77 = vector.broadcast %c-1_i32_30 : i32 to vector<1x512xi32>
    %78 = arith.addi %2, %77 : vector<1x512xi32>
    %c0_i32_31 = arith.constant 0 : i32
    %79 = vector.broadcast %c0_i32_31 : i32 to vector<1x512xi32>
    %80 = arith.cmpi sge, %76, %79 : vector<1x512xi32>
    %c16_i32_32 = arith.constant 16 : i32
    %81 = vector.broadcast %c16_i32_32 : i32 to vector<1x512xi32>
    %82 = arith.cmpi slt, %76, %81 : vector<1x512xi32>
    %83 = arith.andi %80, %82 : vector<1x512xi1>
    %c0_i32_33 = arith.constant 0 : i32
    %84 = vector.broadcast %c0_i32_33 : i32 to vector<1x512xi32>
    %85 = arith.cmpi sge, %78, %84 : vector<1x512xi32>
    %86 = arith.andi %83, %85 : vector<1x512xi1>
    %c16_i32_34 = arith.constant 16 : i32
    %87 = vector.broadcast %c16_i32_34 : i32 to vector<1x512xi32>
    %88 = arith.cmpi slt, %78, %87 : vector<1x512xi32>
    %89 = arith.andi %86, %88 : vector<1x512xi1>
    %cst_35 = arith.constant 1.000000e+00 : f32
    %cst_36 = arith.constant 0.000000e+00 : f32
    %90 = vector.broadcast %cst_35 : f32 to vector<1x512xf32>
    %91 = vector.broadcast %cst_36 : f32 to vector<1x512xf32>
    %92 = arith.select %89, %90, %91 : vector<1x512xi1>, vector<1x512xf32>
    %93 = vector.broadcast %92 : vector<1x512xf32> to vector<4x512xf32>
    %94 = arith.mulf %74, %93 : vector<4x512xf32>
    %c12 = arith.constant 12 : index
    %c0_37 = arith.constant 0 : index
    %95 = vector.load %arg3[%c12, %c0_37] : memref<37x512xf32, #tpu.memory_space<vmem>>, vector<4x512xf32>
    tpu.vector_store %arg3[%c12, %c0_37], %94 {strides = array<i32>} : memref<37x512xf32, #tpu.memory_space<vmem>>, vector<4x512xf32>,
    %c0_38 = arith.constant 0 : index
    %c17 = arith.constant 17 : index
    %96 = vector.load %arg0[%c0_38, %c17] : memref<4x546xf32, #tpu.memory_space<vmem>>, vector<4x512xf32>
    %c0_i32_39 = arith.constant 0 : i32
    %97 = vector.broadcast %c0_i32_39 : i32 to vector<1x512xi32>
    %98 = arith.addi %6, %97 : vector<1x512xi32>
    %c0_i32_40 = arith.constant 0 : i32
    %99 = vector.broadcast %c0_i32_40 : i32 to vector<1x512xi32>
    %100 = arith.addi %2, %99 : vector<1x512xi32>
    %c0_i32_41 = arith.constant 0 : i32
    %101 = vector.broadcast %c0_i32_41 : i32 to vector<1x512xi32>
    %102 = arith.cmpi sge, %98, %101 : vector<1x512xi32>
    %c16_i32_42 = arith.constant 16 : i32
    %103 = vector.broadcast %c16_i32_42 : i32 to vector<1x512xi32>
    %104 = arith.cmpi slt, %98, %103 : vector<1x512xi32>
    %105 = arith.andi %102, %104 : vector<1x512xi1>
    %c0_i32_43 = arith.constant 0 : i32
    %106 = vector.broadcast %c0_i32_43 : i32 to vector<1x512xi32>
    %107 = arith.cmpi sge, %100, %106 : vector<1x512xi32>
    %108 = arith.andi %105, %107 : vector<1x512xi1>
    %c16_i32_44 = arith.constant 16 : i32
    %109 = vector.broadcast %c16_i32_44 : i32 to vector<1x512xi32>
    %110 = arith.cmpi slt, %100, %109 : vector<1x512xi32>
    %111 = arith.andi %108, %110 : vector<1x512xi1>
    %cst_45 = arith.constant 1.000000e+00 : f32
    %cst_46 = arith.constant 0.000000e+00 : f32
    %112 = vector.broadcast %cst_45 : f32 to vector<1x512xf32>
    %113 = vector.broadcast %cst_46 : f32 to vector<1x512xf32>
    %114 = arith.select %111, %112, %113 : vector<1x512xi1>, vector<1x512xf32>
    %115 = vector.broadcast %114 : vector<1x512xf32> to vector<4x512xf32>
    %116 = arith.mulf %96, %115 : vector<4x512xf32>
    %c16_47 = arith.constant 16 : index
    %c0_48 = arith.constant 0 : index
    %117 = vector.load %arg3[%c16_47, %c0_48] : memref<37x512xf32, #tpu.memory_space<vmem>>, vector<4x512xf32>
    tpu.vector_store %arg3[%c16_47, %c0_48], %116 {strides = array<i32>} : memref<37x512xf32, #tpu.memory_space<vmem>>, vector<4x512xf32>,
    %c0_49 = arith.constant 0 : index
    %c18 = arith.constant 18 : index
    %118 = vector.load %arg0[%c0_49, %c18] : memref<4x546xf32, #tpu.memory_space<vmem>>, vector<4x512xf32>
    %c0_i32_50 = arith.constant 0 : i32
    %119 = vector.broadcast %c0_i32_50 : i32 to vector<1x512xi32>
    %120 = arith.addi %6, %119 : vector<1x512xi32>
    %c1_i32_51 = arith.constant 1 : i32
    %121 = vector.broadcast %c1_i32_51 : i32 to vector<1x512xi32>
    %122 = arith.addi %2, %121 : vector<1x512xi32>
    %c0_i32_52 = arith.constant 0 : i32
    %123 = vector.broadcast %c0_i32_52 : i32 to vector<1x512xi32>
    %124 = arith.cmpi sge, %120, %123 : vector<1x512xi32>
    %c16_i32_53 = arith.constant 16 : i32
    %125 = vector.broadcast %c16_i32_53 : i32 to vector<1x512xi32>
    %126 = arith.cmpi slt, %120, %125 : vector<1x512xi32>
    %127 = arith.andi %124, %126 : vector<1x512xi1>
    %c0_i32_54 = arith.constant 0 : i32
    %128 = vector.broadcast %c0_i32_54 : i32 to vector<1x512xi32>
    %129 = arith.cmpi sge, %122, %128 : vector<1x512xi32>
    %130 = arith.andi %127, %129 : vector<1x512xi1>
    %c16_i32_55 = arith.constant 16 : i32
    %131 = vector.broadcast %c16_i32_55 : i32 to vector<1x512xi32>
    %132 = arith.cmpi slt, %122, %131 : vector<1x512xi32>
    %133 = arith.andi %130, %132 : vector<1x512xi1>
    %cst_56 = arith.constant 1.000000e+00 : f32
    %cst_57 = arith.constant 0.000000e+00 : f32
    %134 = vector.broadcast %cst_56 : f32 to vector<1x512xf32>
    %135 = vector.broadcast %cst_57 : f32 to vector<1x512xf32>
    %136 = arith.select %133, %134, %135 : vector<1x512xi1>, vector<1x512xf32>
    %137 = vector.broadcast %136 : vector<1x512xf32> to vector<4x512xf32>
    %138 = arith.mulf %118, %137 : vector<4x512xf32>
    %c20 = arith.constant 20 : index
    %c0_58 = arith.constant 0 : index
    %139 = vector.load %arg3[%c20, %c0_58] : memref<37x512xf32, #tpu.memory_space<vmem>>, vector<4x512xf32>
    tpu.vector_store %arg3[%c20, %c0_58], %138 {strides = array<i32>} : memref<37x512xf32, #tpu.memory_space<vmem>>, vector<4x512xf32>,
    %c0_59 = arith.constant 0 : index
    %c32 = arith.constant 32 : index
    %140 = vector.load %arg0[%c0_59, %c32] : memref<4x546xf32, #tpu.memory_space<vmem>>, vector<4x512xf32>
    %c1_i32_60 = arith.constant 1 : i32
    %141 = vector.broadcast %c1_i32_60 : i32 to vector<1x512xi32>
    %142 = arith.addi %6, %141 : vector<1x512xi32>
    %c-1_i32_61 = arith.constant -1 : i32
    %143 = vector.broadcast %c-1_i32_61 : i32 to vector<1x512xi32>
    %144 = arith.addi %2, %143 : vector<1x512xi32>
    %c0_i32_62 = arith.constant 0 : i32
    %145 = vector.broadcast %c0_i32_62 : i32 to vector<1x512xi32>
    %146 = arith.cmpi sge, %142, %145 : vector<1x512xi32>
    %c16_i32_63 = arith.constant 16 : i32
    %147 = vector.broadcast %c16_i32_63 : i32 to vector<1x512xi32>
    %148 = arith.cmpi slt, %142, %147 : vector<1x512xi32>
    %149 = arith.andi %146, %148 : vector<1x512xi1>
    %c0_i32_64 = arith.constant 0 : i32
    %150 = vector.broadcast %c0_i32_64 : i32 to vector<1x512xi32>
    %151 = arith.cmpi sge, %144, %150 : vector<1x512xi32>
    %152 = arith.andi %149, %151 : vector<1x512xi1>
    %c16_i32_65 = arith.constant 16 : i32
    %153 = vector.broadcast %c16_i32_65 : i32 to vector<1x512xi32>
    %154 = arith.cmpi slt, %144, %153 : vector<1x512xi32>
    %155 = arith.andi %152, %154 : vector<1x512xi1>
    %cst_66 = arith.constant 1.000000e+00 : f32
    %cst_67 = arith.constant 0.000000e+00 : f32
    %156 = vector.broadcast %cst_66 : f32 to vector<1x512xf32>
    %157 = vector.broadcast %cst_67 : f32 to vector<1x512xf32>
    %158 = arith.select %155, %156, %157 : vector<1x512xi1>, vector<1x512xf32>
    %159 = vector.broadcast %158 : vector<1x512xf32> to vector<4x512xf32>
    %160 = arith.mulf %140, %159 : vector<4x512xf32>
    %c24 = arith.constant 24 : index
    %c0_68 = arith.constant 0 : index
    %161 = vector.load %arg3[%c24, %c0_68] : memref<37x512xf32, #tpu.memory_space<vmem>>, vector<4x512xf32>
    tpu.vector_store %arg3[%c24, %c0_68], %160 {strides = array<i32>} : memref<37x512xf32, #tpu.memory_space<vmem>>, vector<4x512xf32>,
    %c0_69 = arith.constant 0 : index
    %c33 = arith.constant 33 : index
    %162 = vector.load %arg0[%c0_69, %c33] : memref<4x546xf32, #tpu.memory_space<vmem>>, vector<4x512xf32>
    %c1_i32_70 = arith.constant 1 : i32
    %163 = vector.broadcast %c1_i32_70 : i32 to vector<1x512xi32>
    %164 = arith.addi %6, %163 : vector<1x512xi32>
    %c0_i32_71 = arith.constant 0 : i32
    %165 = vector.broadcast %c0_i32_71 : i32 to vector<1x512xi32>
    %166 = arith.addi %2, %165 : vector<1x512xi32>
    %c0_i32_72 = arith.constant 0 : i32
    %167 = vector.broadcast %c0_i32_72 : i32 to vector<1x512xi32>
    %168 = arith.cmpi sge, %164, %167 : vector<1x512xi32>
    %c16_i32_73 = arith.constant 16 : i32
    %169 = vector.broadcast %c16_i32_73 : i32 to vector<1x512xi32>
    %170 = arith.cmpi slt, %164, %169 : vector<1x512xi32>
    %171 = arith.andi %168, %170 : vector<1x512xi1>
    %c0_i32_74 = arith.constant 0 : i32
    %172 = vector.broadcast %c0_i32_74 : i32 to vector<1x512xi32>
    %173 = arith.cmpi sge, %166, %172 : vector<1x512xi32>
    %174 = arith.andi %171, %173 : vector<1x512xi1>
    %c16_i32_75 = arith.constant 16 : i32
    %175 = vector.broadcast %c16_i32_75 : i32 to vector<1x512xi32>
    %176 = arith.cmpi slt, %166, %175 : vector<1x512xi32>
    %177 = arith.andi %174, %176 : vector<1x512xi1>
    %cst_76 = arith.constant 1.000000e+00 : f32
    %cst_77 = arith.constant 0.000000e+00 : f32
    %178 = vector.broadcast %cst_76 : f32 to vector<1x512xf32>
    %179 = vector.broadcast %cst_77 : f32 to vector<1x512xf32>
    %180 = arith.select %177, %178, %179 : vector<1x512xi1>, vector<1x512xf32>
    %181 = vector.broadcast %180 : vector<1x512xf32> to vector<4x512xf32>
    %182 = arith.mulf %162, %181 : vector<4x512xf32>
    %c28 = arith.constant 28 : index
    %c0_78 = arith.constant 0 : index
    %183 = vector.load %arg3[%c28, %c0_78] : memref<37x512xf32, #tpu.memory_space<vmem>>, vector<4x512xf32>
    tpu.vector_store %arg3[%c28, %c0_78], %182 {strides = array<i32>} : memref<37x512xf32, #tpu.memory_space<vmem>>, vector<4x512xf32>,
    %c0_79 = arith.constant 0 : index
    %c34 = arith.constant 34 : index
    %184 = vector.load %arg0[%c0_79, %c34] : memref<4x546xf32, #tpu.memory_space<vmem>>, vector<4x512xf32>
    %c1_i32_80 = arith.constant 1 : i32
    %185 = vector.broadcast %c1_i32_80 : i32 to vector<1x512xi32>
    %186 = arith.addi %6, %185 : vector<1x512xi32>
    %c1_i32_81 = arith.constant 1 : i32
    %187 = vector.broadcast %c1_i32_81 : i32 to vector<1x512xi32>
    %188 = arith.addi %2, %187 : vector<1x512xi32>
    %c0_i32_82 = arith.constant 0 : i32
    %189 = vector.broadcast %c0_i32_82 : i32 to vector<1x512xi32>
    %190 = arith.cmpi sge, %186, %189 : vector<1x512xi32>
    %c16_i32_83 = arith.constant 16 : i32
    %191 = vector.broadcast %c16_i32_83 : i32 to vector<1x512xi32>
    %192 = arith.cmpi slt, %186, %191 : vector<1x512xi32>
    %193 = arith.andi %190, %192 : vector<1x512xi1>
    %c0_i32_84 = arith.constant 0 : i32
    %194 = vector.broadcast %c0_i32_84 : i32 to vector<1x512xi32>
    %195 = arith.cmpi sge, %188, %194 : vector<1x512xi32>
    %196 = arith.andi %193, %195 : vector<1x512xi1>
    %c16_i32_85 = arith.constant 16 : i32
    %197 = vector.broadcast %c16_i32_85 : i32 to vector<1x512xi32>
    %198 = arith.cmpi slt, %188, %197 : vector<1x512xi32>
    %199 = arith.andi %196, %198 : vector<1x512xi1>
    %cst_86 = arith.constant 1.000000e+00 : f32
    %cst_87 = arith.constant 0.000000e+00 : f32
    %200 = vector.broadcast %cst_86 : f32 to vector<1x512xf32>
    %201 = vector.broadcast %cst_87 : f32 to vector<1x512xf32>
    %202 = arith.select %199, %200, %201 : vector<1x512xi1>, vector<1x512xf32>
    %203 = vector.broadcast %202 : vector<1x512xf32> to vector<4x512xf32>
    %204 = arith.mulf %184, %203 : vector<4x512xf32>
    %c32_88 = arith.constant 32 : index
    %c0_89 = arith.constant 0 : index
    %205 = vector.load %arg3[%c32_88, %c0_89] : memref<37x512xf32, #tpu.memory_space<vmem>>, vector<4x512xf32>
    tpu.vector_store %arg3[%c32_88, %c0_89], %204 {strides = array<i32>} : memref<37x512xf32, #tpu.memory_space<vmem>>, vector<4x512xf32>,
    %c36 = arith.constant 36 : index
    %c0_90 = arith.constant 0 : index
    %206 = vector.load %arg3[%c36, %c0_90] : memref<37x512xf32, #tpu.memory_space<vmem>>, vector<1x512xf32>
    tpu.vector_store %arg3[%c36, %c0_90], %7 {strides = array<i32>} : memref<37x512xf32, #tpu.memory_space<vmem>>, vector<1x512xf32>,
    %c0_91 = arith.constant 0 : index
    %c0_92 = arith.constant 0 : index
    %207 = vector.load %arg1[%c0_91, %c0_92] : memref<112x128xf32, #tpu.memory_space<vmem>>, vector<8x37xf32>
    %c0_93 = arith.constant 0 : index
    %c0_94 = arith.constant 0 : index
    %208 = vector.load %arg3[%c0_93, %c0_94] : memref<37x512xf32, #tpu.memory_space<vmem>>, vector<37x512xf32>
    %cst_95 = arith.constant dense<0.000000e+00> : vector<8x512xf32>
    %209 = tpu.matmul %207, %208, %cst_95 {dimension_numbers = #tpu.dot_dimension_numbers<[1], [0], [0], [1], [0, 0, 1, 1], [], []>} : vector<8x37xf32>, vector<37x512xf32>, vector<8x512xf32> -> vector<8x512xf32>
    %cst_96 = arith.constant 0.000000e+00 : f32
    %210 = vector.broadcast %cst_96 : f32 to vector<8x512xf32>
    %211 = arith.maximumf %209, %210 : vector<8x512xf32>
    %cst_97 = arith.constant 0.000000e+00 : f32
    %212 = vector.broadcast %cst_97 : f32 to vector<8x17xf32>
    %c0_98 = arith.constant 0 : index
    %c0_99 = arith.constant 0 : index
    %213 = vector.load %arg4[%c0_98, %c0_99] : memref<8x546xf32, #tpu.memory_space<vmem>>, vector<8x17xf32>
    tpu.vector_store %arg4[%c0_98, %c0_99], %212 {strides = array<i32>} : memref<8x546xf32, #tpu.memory_space<vmem>>, vector<8x17xf32>,
    %cst_100 = arith.constant 0.000000e+00 : f32
    %214 = vector.broadcast %cst_100 : f32 to vector<8x17xf32>
    %c0_101 = arith.constant 0 : index
    %c529 = arith.constant 529 : index
    %215 = vector.load %arg4[%c0_101, %c529] : memref<8x546xf32, #tpu.memory_space<vmem>>, vector<8x17xf32>
    tpu.vector_store %arg4[%c0_101, %c529], %214 {strides = array<i32>} : memref<8x546xf32, #tpu.memory_space<vmem>>, vector<8x17xf32>,
    %c0_102 = arith.constant 0 : index
    %c17_103 = arith.constant 17 : index
    %216 = vector.load %arg4[%c0_102, %c17_103] : memref<8x546xf32, #tpu.memory_space<vmem>>, vector<8x512xf32>
    tpu.vector_store %arg4[%c0_102, %c17_103], %211 {strides = array<i32>} : memref<8x546xf32, #tpu.memory_space<vmem>>, vector<8x512xf32>,
    %c0_104 = arith.constant 0 : index
    %c0_105 = arith.constant 0 : index
    %217 = vector.load %arg4[%c0_104, %c0_105] : memref<8x546xf32, #tpu.memory_space<vmem>>, vector<8x512xf32>
    %c-1_i32_106 = arith.constant -1 : i32
    %218 = vector.broadcast %c-1_i32_106 : i32 to vector<1x512xi32>
    %219 = arith.addi %6, %218 : vector<1x512xi32>
    %c-1_i32_107 = arith.constant -1 : i32
    %220 = vector.broadcast %c-1_i32_107 : i32 to vector<1x512xi32>
    %221 = arith.addi %2, %220 : vector<1x512xi32>
    %c0_i32_108 = arith.constant 0 : i32
    %222 = vector.broadcast %c0_i32_108 : i32 to vector<1x512xi32>
    %223 = arith.cmpi sge, %219, %222 : vector<1x512xi32>
    %c16_i32_109 = arith.constant 16 : i32
    %224 = vector.broadcast %c16_i32_109 : i32 to vector<1x512xi32>
    %225 = arith.cmpi slt, %219, %224 : vector<1x512xi32>
    %226 = arith.andi %223, %225 : vector<1x512xi1>
    %c0_i32_110 = arith.constant 0 : i32
    %227 = vector.broadcast %c0_i32_110 : i32 to vector<1x512xi32>
    %228 = arith.cmpi sge, %221, %227 : vector<1x512xi32>
    %229 = arith.andi %226, %228 : vector<1x512xi1>
    %c16_i32_111 = arith.constant 16 : i32
    %230 = vector.broadcast %c16_i32_111 : i32 to vector<1x512xi32>
    %231 = arith.cmpi slt, %221, %230 : vector<1x512xi32>
    %232 = arith.andi %229, %231 : vector<1x512xi1>
    %cst_112 = arith.constant 1.000000e+00 : f32
    %cst_113 = arith.constant 0.000000e+00 : f32
    %233 = vector.broadcast %cst_112 : f32 to vector<1x512xf32>
    %234 = vector.broadcast %cst_113 : f32 to vector<1x512xf32>
    %235 = arith.select %232, %233, %234 : vector<1x512xi1>, vector<1x512xf32>
    %236 = vector.broadcast %235 : vector<1x512xf32> to vector<8x512xf32>
    %237 = arith.mulf %217, %236 : vector<8x512xf32>
    %c0_114 = arith.constant 0 : index
    %c0_115 = arith.constant 0 : index
    %238 = vector.load %arg5[%c0_114, %c0_115] : memref<73x512xf32, #tpu.memory_space<vmem>>, vector<8x512xf32>
    tpu.vector_store %arg5[%c0_114, %c0_115], %237 {strides = array<i32>} : memref<73x512xf32, #tpu.memory_space<vmem>>, vector<8x512xf32>,
    %c0_116 = arith.constant 0 : index
    %c1_117 = arith.constant 1 : index
    %239 = vector.load %arg4[%c0_116, %c1_117] : memref<8x546xf32, #tpu.memory_space<vmem>>, vector<8x512xf32>
    %c-1_i32_118 = arith.constant -1 : i32
    %240 = vector.broadcast %c-1_i32_118 : i32 to vector<1x512xi32>
    %241 = arith.addi %6, %240 : vector<1x512xi32>
    %c0_i32_119 = arith.constant 0 : i32
    %242 = vector.broadcast %c0_i32_119 : i32 to vector<1x512xi32>
    %243 = arith.addi %2, %242 : vector<1x512xi32>
    %c0_i32_120 = arith.constant 0 : i32
    %244 = vector.broadcast %c0_i32_120 : i32 to vector<1x512xi32>
    %245 = arith.cmpi sge, %241, %244 : vector<1x512xi32>
    %c16_i32_121 = arith.constant 16 : i32
    %246 = vector.broadcast %c16_i32_121 : i32 to vector<1x512xi32>
    %247 = arith.cmpi slt, %241, %246 : vector<1x512xi32>
    %248 = arith.andi %245, %247 : vector<1x512xi1>
    %c0_i32_122 = arith.constant 0 : i32
    %249 = vector.broadcast %c0_i32_122 : i32 to vector<1x512xi32>
    %250 = arith.cmpi sge, %243, %249 : vector<1x512xi32>
    %251 = arith.andi %248, %250 : vector<1x512xi1>
    %c16_i32_123 = arith.constant 16 : i32
    %252 = vector.broadcast %c16_i32_123 : i32 to vector<1x512xi32>
    %253 = arith.cmpi slt, %243, %252 : vector<1x512xi32>
    %254 = arith.andi %251, %253 : vector<1x512xi1>
    %cst_124 = arith.constant 1.000000e+00 : f32
    %cst_125 = arith.constant 0.000000e+00 : f32
    %255 = vector.broadcast %cst_124 : f32 to vector<1x512xf32>
    %256 = vector.broadcast %cst_125 : f32 to vector<1x512xf32>
    %257 = arith.select %254, %255, %256 : vector<1x512xi1>, vector<1x512xf32>
    %258 = vector.broadcast %257 : vector<1x512xf32> to vector<8x512xf32>
    %259 = arith.mulf %239, %258 : vector<8x512xf32>
    %c8_126 = arith.constant 8 : index
    %c0_127 = arith.constant 0 : index
    %260 = vector.load %arg5[%c8_126, %c0_127] : memref<73x512xf32, #tpu.memory_space<vmem>>, vector<8x512xf32>
    tpu.vector_store %arg5[%c8_126, %c0_127], %259 {strides = array<i32>} : memref<73x512xf32, #tpu.memory_space<vmem>>, vector<8x512xf32>,
    %c0_128 = arith.constant 0 : index
    %c2_129 = arith.constant 2 : index
    %261 = vector.load %arg4[%c0_128, %c2_129] : memref<8x546xf32, #tpu.memory_space<vmem>>, vector<8x512xf32>
    %c-1_i32_130 = arith.constant -1 : i32
    %262 = vector.broadcast %c-1_i32_130 : i32 to vector<1x512xi32>
    %263 = arith.addi %6, %262 : vector<1x512xi32>
    %c1_i32_131 = arith.constant 1 : i32
    %264 = vector.broadcast %c1_i32_131 : i32 to vector<1x512xi32>
    %265 = arith.addi %2, %264 : vector<1x512xi32>
    %c0_i32_132 = arith.constant 0 : i32
    %266 = vector.broadcast %c0_i32_132 : i32 to vector<1x512xi32>
    %267 = arith.cmpi sge, %263, %266 : vector<1x512xi32>
    %c16_i32_133 = arith.constant 16 : i32
    %268 = vector.broadcast %c16_i32_133 : i32 to vector<1x512xi32>
    %269 = arith.cmpi slt, %263, %268 : vector<1x512xi32>
    %270 = arith.andi %267, %269 : vector<1x512xi1>
    %c0_i32_134 = arith.constant 0 : i32
    %271 = vector.broadcast %c0_i32_134 : i32 to vector<1x512xi32>
    %272 = arith.cmpi sge, %265, %271 : vector<1x512xi32>
    %273 = arith.andi %270, %272 : vector<1x512xi1>
    %c16_i32_135 = arith.constant 16 : i32
    %274 = vector.broadcast %c16_i32_135 : i32 to vector<1x512xi32>
    %275 = arith.cmpi slt, %265, %274 : vector<1x512xi32>
    %276 = arith.andi %273, %275 : vector<1x512xi1>
    %cst_136 = arith.constant 1.000000e+00 : f32
    %cst_137 = arith.constant 0.000000e+00 : f32
    %277 = vector.broadcast %cst_136 : f32 to vector<1x512xf32>
    %278 = vector.broadcast %cst_137 : f32 to vector<1x512xf32>
    %279 = arith.select %276, %277, %278 : vector<1x512xi1>, vector<1x512xf32>
    %280 = vector.broadcast %279 : vector<1x512xf32> to vector<8x512xf32>
    %281 = arith.mulf %261, %280 : vector<8x512xf32>
    %c16_138 = arith.constant 16 : index
    %c0_139 = arith.constant 0 : index
    %282 = vector.load %arg5[%c16_138, %c0_139] : memref<73x512xf32, #tpu.memory_space<vmem>>, vector<8x512xf32>
    tpu.vector_store %arg5[%c16_138, %c0_139], %281 {strides = array<i32>} : memref<73x512xf32, #tpu.memory_space<vmem>>, vector<8x512xf32>,
    %c0_140 = arith.constant 0 : index
    %c16_141 = arith.constant 16 : index
    %283 = vector.load %arg4[%c0_140, %c16_141] : memref<8x546xf32, #tpu.memory_space<vmem>>, vector<8x512xf32>
    %c0_i32_142 = arith.constant 0 : i32
    %284 = vector.broadcast %c0_i32_142 : i32 to vector<1x512xi32>
    %285 = arith.addi %6, %284 : vector<1x512xi32>
    %c-1_i32_143 = arith.constant -1 : i32
    %286 = vector.broadcast %c-1_i32_143 : i32 to vector<1x512xi32>
    %287 = arith.addi %2, %286 : vector<1x512xi32>
    %c0_i32_144 = arith.constant 0 : i32
    %288 = vector.broadcast %c0_i32_144 : i32 to vector<1x512xi32>
    %289 = arith.cmpi sge, %285, %288 : vector<1x512xi32>
    %c16_i32_145 = arith.constant 16 : i32
    %290 = vector.broadcast %c16_i32_145 : i32 to vector<1x512xi32>
    %291 = arith.cmpi slt, %285, %290 : vector<1x512xi32>
    %292 = arith.andi %289, %291 : vector<1x512xi1>
    %c0_i32_146 = arith.constant 0 : i32
    %293 = vector.broadcast %c0_i32_146 : i32 to vector<1x512xi32>
    %294 = arith.cmpi sge, %287, %293 : vector<1x512xi32>
    %295 = arith.andi %292, %294 : vector<1x512xi1>
    %c16_i32_147 = arith.constant 16 : i32
    %296 = vector.broadcast %c16_i32_147 : i32 to vector<1x512xi32>
    %297 = arith.cmpi slt, %287, %296 : vector<1x512xi32>
    %298 = arith.andi %295, %297 : vector<1x512xi1>
    %cst_148 = arith.constant 1.000000e+00 : f32
    %cst_149 = arith.constant 0.000000e+00 : f32
    %299 = vector.broadcast %cst_148 : f32 to vector<1x512xf32>
    %300 = vector.broadcast %cst_149 : f32 to vector<1x512xf32>
    %301 = arith.select %298, %299, %300 : vector<1x512xi1>, vector<1x512xf32>
    %302 = vector.broadcast %301 : vector<1x512xf32> to vector<8x512xf32>
    %303 = arith.mulf %283, %302 : vector<8x512xf32>
    %c24_150 = arith.constant 24 : index
    %c0_151 = arith.constant 0 : index
    %304 = vector.load %arg5[%c24_150, %c0_151] : memref<73x512xf32, #tpu.memory_space<vmem>>, vector<8x512xf32>
    tpu.vector_store %arg5[%c24_150, %c0_151], %303 {strides = array<i32>} : memref<73x512xf32, #tpu.memory_space<vmem>>, vector<8x512xf32>,
    %c0_152 = arith.constant 0 : index
    %c17_153 = arith.constant 17 : index
    %305 = vector.load %arg4[%c0_152, %c17_153] : memref<8x546xf32, #tpu.memory_space<vmem>>, vector<8x512xf32>
    %c0_i32_154 = arith.constant 0 : i32
    %306 = vector.broadcast %c0_i32_154 : i32 to vector<1x512xi32>
    %307 = arith.addi %6, %306 : vector<1x512xi32>
    %c0_i32_155 = arith.constant 0 : i32
    %308 = vector.broadcast %c0_i32_155 : i32 to vector<1x512xi32>
    %309 = arith.addi %2, %308 : vector<1x512xi32>
    %c0_i32_156 = arith.constant 0 : i32
    %310 = vector.broadcast %c0_i32_156 : i32 to vector<1x512xi32>
    %311 = arith.cmpi sge, %307, %310 : vector<1x512xi32>
    %c16_i32_157 = arith.constant 16 : i32
    %312 = vector.broadcast %c16_i32_157 : i32 to vector<1x512xi32>
    %313 = arith.cmpi slt, %307, %312 : vector<1x512xi32>
    %314 = arith.andi %311, %313 : vector<1x512xi1>
    %c0_i32_158 = arith.constant 0 : i32
    %315 = vector.broadcast %c0_i32_158 : i32 to vector<1x512xi32>
    %316 = arith.cmpi sge, %309, %315 : vector<1x512xi32>
    %317 = arith.andi %314, %316 : vector<1x512xi1>
    %c16_i32_159 = arith.constant 16 : i32
    %318 = vector.broadcast %c16_i32_159 : i32 to vector<1x512xi32>
    %319 = arith.cmpi slt, %309, %318 : vector<1x512xi32>
    %320 = arith.andi %317, %319 : vector<1x512xi1>
    %cst_160 = arith.constant 1.000000e+00 : f32
    %cst_161 = arith.constant 0.000000e+00 : f32
    %321 = vector.broadcast %cst_160 : f32 to vector<1x512xf32>
    %322 = vector.broadcast %cst_161 : f32 to vector<1x512xf32>
    %323 = arith.select %320, %321, %322 : vector<1x512xi1>, vector<1x512xf32>
    %324 = vector.broadcast %323 : vector<1x512xf32> to vector<8x512xf32>
    %325 = arith.mulf %305, %324 : vector<8x512xf32>
    %c32_162 = arith.constant 32 : index
    %c0_163 = arith.constant 0 : index
    %326 = vector.load %arg5[%c32_162, %c0_163] : memref<73x512xf32, #tpu.memory_space<vmem>>, vector<8x512xf32>
    tpu.vector_store %arg5[%c32_162, %c0_163], %325 {strides = array<i32>} : memref<73x512xf32, #tpu.memory_space<vmem>>, vector<8x512xf32>,
    %c0_164 = arith.constant 0 : index
    %c18_165 = arith.constant 18 : index
    %327 = vector.load %arg4[%c0_164, %c18_165] : memref<8x546xf32, #tpu.memory_space<vmem>>, vector<8x512xf32>
    %c0_i32_166 = arith.constant 0 : i32
    %328 = vector.broadcast %c0_i32_166 : i32 to vector<1x512xi32>
    %329 = arith.addi %6, %328 : vector<1x512xi32>
    %c1_i32_167 = arith.constant 1 : i32
    %330 = vector.broadcast %c1_i32_167 : i32 to vector<1x512xi32>
    %331 = arith.addi %2, %330 : vector<1x512xi32>
    %c0_i32_168 = arith.constant 0 : i32
    %332 = vector.broadcast %c0_i32_168 : i32 to vector<1x512xi32>
    %333 = arith.cmpi sge, %329, %332 : vector<1x512xi32>
    %c16_i32_169 = arith.constant 16 : i32
    %334 = vector.broadcast %c16_i32_169 : i32 to vector<1x512xi32>
    %335 = arith.cmpi slt, %329, %334 : vector<1x512xi32>
    %336 = arith.andi %333, %335 : vector<1x512xi1>
    %c0_i32_170 = arith.constant 0 : i32
    %337 = vector.broadcast %c0_i32_170 : i32 to vector<1x512xi32>
    %338 = arith.cmpi sge, %331, %337 : vector<1x512xi32>
    %339 = arith.andi %336, %338 : vector<1x512xi1>
    %c16_i32_171 = arith.constant 16 : i32
    %340 = vector.broadcast %c16_i32_171 : i32 to vector<1x512xi32>
    %341 = arith.cmpi slt, %331, %340 : vector<1x512xi32>
    %342 = arith.andi %339, %341 : vector<1x512xi1>
    %cst_172 = arith.constant 1.000000e+00 : f32
    %cst_173 = arith.constant 0.000000e+00 : f32
    %343 = vector.broadcast %cst_172 : f32 to vector<1x512xf32>
    %344 = vector.broadcast %cst_173 : f32 to vector<1x512xf32>
    %345 = arith.select %342, %343, %344 : vector<1x512xi1>, vector<1x512xf32>
    %346 = vector.broadcast %345 : vector<1x512xf32> to vector<8x512xf32>
    %347 = arith.mulf %327, %346 : vector<8x512xf32>
    %c40 = arith.constant 40 : index
    %c0_174 = arith.constant 0 : index
    %348 = vector.load %arg5[%c40, %c0_174] : memref<73x512xf32, #tpu.memory_space<vmem>>, vector<8x512xf32>
    tpu.vector_store %arg5[%c40, %c0_174], %347 {strides = array<i32>} : memref<73x512xf32, #tpu.memory_space<vmem>>, vector<8x512xf32>,
    %c0_175 = arith.constant 0 : index
    %c32_176 = arith.constant 32 : index
    %349 = vector.load %arg4[%c0_175, %c32_176] : memref<8x546xf32, #tpu.memory_space<vmem>>, vector<8x512xf32>
    %c1_i32_177 = arith.constant 1 : i32
    %350 = vector.broadcast %c1_i32_177 : i32 to vector<1x512xi32>
    %351 = arith.addi %6, %350 : vector<1x512xi32>
    %c-1_i32_178 = arith.constant -1 : i32
    %352 = vector.broadcast %c-1_i32_178 : i32 to vector<1x512xi32>
    %353 = arith.addi %2, %352 : vector<1x512xi32>
    %c0_i32_179 = arith.constant 0 : i32
    %354 = vector.broadcast %c0_i32_179 : i32 to vector<1x512xi32>
    %355 = arith.cmpi sge, %351, %354 : vector<1x512xi32>
    %c16_i32_180 = arith.constant 16 : i32
    %356 = vector.broadcast %c16_i32_180 : i32 to vector<1x512xi32>
    %357 = arith.cmpi slt, %351, %356 : vector<1x512xi32>
    %358 = arith.andi %355, %357 : vector<1x512xi1>
    %c0_i32_181 = arith.constant 0 : i32
    %359 = vector.broadcast %c0_i32_181 : i32 to vector<1x512xi32>
    %360 = arith.cmpi sge, %353, %359 : vector<1x512xi32>
    %361 = arith.andi %358, %360 : vector<1x512xi1>
    %c16_i32_182 = arith.constant 16 : i32
    %362 = vector.broadcast %c16_i32_182 : i32 to vector<1x512xi32>
    %363 = arith.cmpi slt, %353, %362 : vector<1x512xi32>
    %364 = arith.andi %361, %363 : vector<1x512xi1>
    %cst_183 = arith.constant 1.000000e+00 : f32
    %cst_184 = arith.constant 0.000000e+00 : f32
    %365 = vector.broadcast %cst_183 : f32 to vector<1x512xf32>
    %366 = vector.broadcast %cst_184 : f32 to vector<1x512xf32>
    %367 = arith.select %364, %365, %366 : vector<1x512xi1>, vector<1x512xf32>
    %368 = vector.broadcast %367 : vector<1x512xf32> to vector<8x512xf32>
    %369 = arith.mulf %349, %368 : vector<8x512xf32>
    %c48 = arith.constant 48 : index
    %c0_185 = arith.constant 0 : index
    %370 = vector.load %arg5[%c48, %c0_185] : memref<73x512xf32, #tpu.memory_space<vmem>>, vector<8x512xf32>
    tpu.vector_store %arg5[%c48, %c0_185], %369 {strides = array<i32>} : memref<73x512xf32, #tpu.memory_space<vmem>>, vector<8x512xf32>,
    %c0_186 = arith.constant 0 : index
    %c33_187 = arith.constant 33 : index
    %371 = vector.load %arg4[%c0_186, %c33_187] : memref<8x546xf32, #tpu.memory_space<vmem>>, vector<8x512xf32>
    %c1_i32_188 = arith.constant 1 : i32
    %372 = vector.broadcast %c1_i32_188 : i32 to vector<1x512xi32>
    %373 = arith.addi %6, %372 : vector<1x512xi32>
    %c0_i32_189 = arith.constant 0 : i32
    %374 = vector.broadcast %c0_i32_189 : i32 to vector<1x512xi32>
    %375 = arith.addi %2, %374 : vector<1x512xi32>
    %c0_i32_190 = arith.constant 0 : i32
    %376 = vector.broadcast %c0_i32_190 : i32 to vector<1x512xi32>
    %377 = arith.cmpi sge, %373, %376 : vector<1x512xi32>
    %c16_i32_191 = arith.constant 16 : i32
    %378 = vector.broadcast %c16_i32_191 : i32 to vector<1x512xi32>
    %379 = arith.cmpi slt, %373, %378 : vector<1x512xi32>
    %380 = arith.andi %377, %379 : vector<1x512xi1>
    %c0_i32_192 = arith.constant 0 : i32
    %381 = vector.broadcast %c0_i32_192 : i32 to vector<1x512xi32>
    %382 = arith.cmpi sge, %375, %381 : vector<1x512xi32>
    %383 = arith.andi %380, %382 : vector<1x512xi1>
    %c16_i32_193 = arith.constant 16 : i32
    %384 = vector.broadcast %c16_i32_193 : i32 to vector<1x512xi32>
    %385 = arith.cmpi slt, %375, %384 : vector<1x512xi32>
    %386 = arith.andi %383, %385 : vector<1x512xi1>
    %cst_194 = arith.constant 1.000000e+00 : f32
    %cst_195 = arith.constant 0.000000e+00 : f32
    %387 = vector.broadcast %cst_194 : f32 to vector<1x512xf32>
    %388 = vector.broadcast %cst_195 : f32 to vector<1x512xf32>
    %389 = arith.select %386, %387, %388 : vector<1x512xi1>, vector<1x512xf32>
    %390 = vector.broadcast %389 : vector<1x512xf32> to vector<8x512xf32>
    %391 = arith.mulf %371, %390 : vector<8x512xf32>
    %c56 = arith.constant 56 : index
    %c0_196 = arith.constant 0 : index
    %392 = vector.load %arg5[%c56, %c0_196] : memref<73x512xf32, #tpu.memory_space<vmem>>, vector<8x512xf32>
    tpu.vector_store %arg5[%c56, %c0_196], %391 {strides = array<i32>} : memref<73x512xf32, #tpu.memory_space<vmem>>, vector<8x512xf32>,
    %c0_197 = arith.constant 0 : index
    %c34_198 = arith.constant 34 : index
    %393 = vector.load %arg4[%c0_197, %c34_198] : memref<8x546xf32, #tpu.memory_space<vmem>>, vector<8x512xf32>
    %c1_i32_199 = arith.constant 1 : i32
    %394 = vector.broadcast %c1_i32_199 : i32 to vector<1x512xi32>
    %395 = arith.addi %6, %394 : vector<1x512xi32>
    %c1_i32_200 = arith.constant 1 : i32
    %396 = vector.broadcast %c1_i32_200 : i32 to vector<1x512xi32>
    %397 = arith.addi %2, %396 : vector<1x512xi32>
    %c0_i32_201 = arith.constant 0 : i32
    %398 = vector.broadcast %c0_i32_201 : i32 to vector<1x512xi32>
    %399 = arith.cmpi sge, %395, %398 : vector<1x512xi32>
    %c16_i32_202 = arith.constant 16 : i32
    %400 = vector.broadcast %c16_i32_202 : i32 to vector<1x512xi32>
    %401 = arith.cmpi slt, %395, %400 : vector<1x512xi32>
    %402 = arith.andi %399, %401 : vector<1x512xi1>
    %c0_i32_203 = arith.constant 0 : i32
    %403 = vector.broadcast %c0_i32_203 : i32 to vector<1x512xi32>
    %404 = arith.cmpi sge, %397, %403 : vector<1x512xi32>
    %405 = arith.andi %402, %404 : vector<1x512xi1>
    %c16_i32_204 = arith.constant 16 : i32
    %406 = vector.broadcast %c16_i32_204 : i32 to vector<1x512xi32>
    %407 = arith.cmpi slt, %397, %406 : vector<1x512xi32>
    %408 = arith.andi %405, %407 : vector<1x512xi1>
    %cst_205 = arith.constant 1.000000e+00 : f32
    %cst_206 = arith.constant 0.000000e+00 : f32
    %409 = vector.broadcast %cst_205 : f32 to vector<1x512xf32>
    %410 = vector.broadcast %cst_206 : f32 to vector<1x512xf32>
    %411 = arith.select %408, %409, %410 : vector<1x512xi1>, vector<1x512xf32>
    %412 = vector.broadcast %411 : vector<1x512xf32> to vector<8x512xf32>
    %413 = arith.mulf %393, %412 : vector<8x512xf32>
    %c64 = arith.constant 64 : index
    %c0_207 = arith.constant 0 : index
    %414 = vector.load %arg5[%c64, %c0_207] : memref<73x512xf32, #tpu.memory_space<vmem>>, vector<8x512xf32>
    tpu.vector_store %arg5[%c64, %c0_207], %413 {strides = array<i32>} : memref<73x512xf32, #tpu.memory_space<vmem>>, vector<8x512xf32>,
    %c72 = arith.constant 72 : index
    %c0_208 = arith.constant 0 : index
    %415 = vector.load %arg5[%c72, %c0_208] : memref<73x512xf32, #tpu.memory_space<vmem>>, vector<1x512xf32>
    tpu.vector_store %arg5[%c72, %c0_208], %7 {strides = array<i32>} : memref<73x512xf32, #tpu.memory_space<vmem>>, vector<1x512xf32>,
    %c8_209 = arith.constant 8 : index
    %c0_210 = arith.constant 0 : index
    %416 = vector.load %arg1[%c8_209, %c0_210] : memref<112x128xf32, #tpu.memory_space<vmem>>, vector<16x73xf32>
    %c0_211 = arith.constant 0 : index
    %c0_212 = arith.constant 0 : index
    %417 = vector.load %arg5[%c0_211, %c0_212] : memref<73x512xf32, #tpu.memory_space<vmem>>, vector<73x512xf32>
    %cst_213 = arith.constant dense<0.000000e+00> : vector<16x512xf32>
    %418 = tpu.matmul %416, %417, %cst_213 {dimension_numbers = #tpu.dot_dimension_numbers<[1], [0], [0], [1], [0, 0, 1, 1], [], []>} : vector<16x73xf32>, vector<73x512xf32>, vector<16x512xf32> -> vector<16x512xf32>
    %cst_214 = arith.constant 0.000000e+00 : f32
    %419 = vector.broadcast %cst_214 : f32 to vector<16x512xf32>
    %420 = arith.maximumf %418, %419 : vector<16x512xf32>
    %421 = tpu.iota {dimensions = array<i32: 1>} : vector<2x512xi32>
    %422 = tpu.iota {dimensions = array<i32: 0>} : vector<2x512xi32>
    %c4_i32_215 = arith.constant 4 : i32
    %423 = vector.broadcast %c4_i32_215 : i32 to vector<2x512xi32>
    %424 = arith.shrsi %421, %423 : vector<2x512xi32>
    %c15_i32_216 = arith.constant 15 : i32
    %425 = vector.broadcast %c15_i32_216 : i32 to vector<2x512xi32>
    %426 = arith.andi %424, %425 : vector<2x512xi32>
    %c15_i32_217 = arith.constant 15 : i32
    %427 = vector.broadcast %c15_i32_217 : i32 to vector<2x512xi32>
    %428 = arith.andi %421, %427 : vector<2x512xi32>
    %c8_i32 = arith.constant 8 : i32
    %429 = vector.broadcast %c8_i32 : i32 to vector<2x512xi32>
    %430 = arith.shrsi %421, %429 : vector<2x512xi32>
    %431 = arith.cmpi eq, %430, %422 : vector<2x512xi32>
    %c1_i32_218 = arith.constant 1 : i32
    %432 = vector.broadcast %c1_i32_218 : i32 to vector<2x512xi32>
    %433 = arith.andi %426, %432 : vector<2x512xi32>
    %c0_i32_219 = arith.constant 0 : i32
    %434 = vector.broadcast %c0_i32_219 : i32 to vector<2x512xi32>
    %435 = arith.cmpi eq, %433, %434 : vector<2x512xi32>
    %436 = arith.andi %431, %435 : vector<2x512xi1>
    %c1_i32_220 = arith.constant 1 : i32
    %437 = vector.broadcast %c1_i32_220 : i32 to vector<2x512xi32>
    %438 = arith.andi %428, %437 : vector<2x512xi32>
    %c0_i32_221 = arith.constant 0 : i32
    %439 = vector.broadcast %c0_i32_221 : i32 to vector<2x512xi32>
    %440 = arith.cmpi eq, %438, %439 : vector<2x512xi32>
    %441 = arith.andi %436, %440 : vector<2x512xi1>
    %cst_222 = arith.constant 1.562500e-02 : f32
    %cst_223 = arith.constant 0.000000e+00 : f32
    %442 = vector.broadcast %cst_222 : f32 to vector<2x512xf32>
    %443 = vector.broadcast %cst_223 : f32 to vector<2x512xf32>
    %444 = arith.select %441, %442, %443 : vector<2x512xi1>, vector<2x512xf32>
    %cst_224 = arith.constant dense<0.000000e+00> : vector<2x16xf32>
    %445 = tpu.matmul %444, %420, %cst_224 {dimension_numbers = #tpu.dot_dimension_numbers<[1], [1], [0], [0], [0, 0, 1, 0], [], []>} : vector<2x512xf32>, vector<16x512xf32>, vector<2x16xf32> -> vector<2x16xf32>
    %c24_225 = arith.constant 24 : index
    %c0_226 = arith.constant 0 : index
    %446 = vector.load %arg1[%c24_225, %c0_226] : memref<112x128xf32, #tpu.memory_space<vmem>>, vector<16x32xf32>
    %cst_227 = arith.constant dense<0.000000e+00> : vector<2x32xf32>
    %447 = tpu.matmul %445, %446, %cst_227 {dimension_numbers = #tpu.dot_dimension_numbers<[1], [0], [0], [1], [0, 0, 1, 1], [], []>} : vector<2x16xf32>, vector<16x32xf32>, vector<2x32xf32> -> vector<2x32xf32>
    %c104 = arith.constant 104 : index
    %c0_228 = arith.constant 0 : index
    %448 = vector.load %arg1[%c104, %c0_228] : memref<112x128xf32, #tpu.memory_space<vmem>>, vector<1x32xf32>
    %449 = vector.broadcast %448 : vector<1x32xf32> to vector<2x32xf32>
    %450 = arith.addf %447, %449 : vector<2x32xf32>
    %cst_229 = arith.constant 0.000000e+00 : f32
    %451 = vector.broadcast %cst_229 : f32 to vector<2x32xf32>
    %452 = arith.maximumf %450, %451 : vector<2x32xf32>
    %c40_230 = arith.constant 40 : index
    %c0_231 = arith.constant 0 : index
    %453 = vector.load %arg1[%c40_230, %c0_231] : memref<112x128xf32, #tpu.memory_space<vmem>>, vector<32x32xf32>
    %cst_232 = arith.constant dense<0.000000e+00> : vector<2x32xf32>
    %454 = tpu.matmul %452, %453, %cst_232 {dimension_numbers = #tpu.dot_dimension_numbers<[1], [0], [0], [1], [0, 0, 1, 1], [], []>} : vector<2x32xf32>, vector<32x32xf32>, vector<2x32xf32> -> vector<2x32xf32>
    %c105 = arith.constant 105 : index
    %c0_233 = arith.constant 0 : index
    %455 = vector.load %arg1[%c105, %c0_233] : memref<112x128xf32, #tpu.memory_space<vmem>>, vector<1x32xf32>
    %456 = vector.broadcast %455 : vector<1x32xf32> to vector<2x32xf32>
    %457 = arith.addf %454, %456 : vector<2x32xf32>
    %cst_234 = arith.constant 0.000000e+00 : f32
    %458 = vector.broadcast %cst_234 : f32 to vector<2x32xf32>
    %459 = arith.maximumf %457, %458 : vector<2x32xf32>
    %c72_235 = arith.constant 72 : index
    %c0_236 = arith.constant 0 : index
    %460 = vector.load %arg1[%c72_235, %c0_236] : memref<112x128xf32, #tpu.memory_space<vmem>>, vector<32x16xf32>
    %cst_237 = arith.constant dense<0.000000e+00> : vector<2x16xf32>
    %461 = tpu.matmul %459, %460, %cst_237 {dimension_numbers = #tpu.dot_dimension_numbers<[1], [0], [0], [1], [0, 0, 1, 1], [], []>} : vector<2x32xf32>, vector<32x16xf32>, vector<2x16xf32> -> vector<2x16xf32>
    %c106 = arith.constant 106 : index
    %c0_238 = arith.constant 0 : index
    %462 = vector.load %arg1[%c106, %c0_238] : memref<112x128xf32, #tpu.memory_space<vmem>>, vector<1x16xf32>
    %463 = vector.broadcast %462 : vector<1x16xf32> to vector<2x16xf32>
    %464 = arith.addf %461, %463 : vector<2x16xf32>
    %465 = vector.extract_strided_slice %464 {offsets = [0, 12], sizes = [2, 4], strides = [1, 1]} : vector<2x16xf32> to vector<2x4xf32>
    %466 = arith.mulf %465, %465 : vector<2x4xf32>
    %cst_239 = arith.constant dense<0.000000e+00> : vector<2xf32>
    %467 = vector.multi_reduction <add>, %466, %cst_239 [1] : vector<2x4xf32> to vector<2xf32>
    %468 = vector.shape_cast %467 : vector<2xf32> to vector<2x1xf32>
    %cst_240 = arith.constant 9.99999996E-13 : f32
    %469 = vector.broadcast %cst_240 : f32 to vector<2x1xf32>
    %470 = arith.addf %468, %469 : vector<2x1xf32>
    %471 = math.rsqrt %470 : vector<2x1xf32>
    %472 = vector.extract_strided_slice %464 {offsets = [0, 0], sizes = [2, 12], strides = [1, 1]} : vector<2x16xf32> to vector<2x12xf32>
    %c0_241 = arith.constant 0 : index
    %c0_242 = arith.constant 0 : index
    %473 = vector.load %arg2[%c0_241, %c0_242] : memref<2x16xf32, #tpu.memory_space<vmem>>, vector<2x12xf32>
    tpu.vector_store %arg2[%c0_241, %c0_242], %472 {strides = array<i32>} : memref<2x16xf32, #tpu.memory_space<vmem>>, vector<2x12xf32>,
    %474 = vector.broadcast %471 : vector<2x1xf32> to vector<2x4xf32>
    %475 = arith.mulf %465, %474 : vector<2x4xf32>
    %c0_243 = arith.constant 0 : index
    %c12_244 = arith.constant 12 : index
    %476 = vector.load %arg2[%c0_243, %c12_244] : memref<2x16xf32, #tpu.memory_space<vmem>>, vector<2x4xf32>
    tpu.vector_store %arg2[%c0_243, %c12_244], %475 {strides = array<i32>} : memref<2x16xf32, #tpu.memory_space<vmem>>, vector<2x4xf32>,
    return
  }
}

</mosaic_0001>

<llo_original>
// kernel: sdf_pose_net_forward.1
$region0: #{sdf_pose_net_forward.1}
  #allocation0 [shape = 'u32[]', space=smem, size = 0x4, offset = 0x4, fixed_abs, tag = 'smem constant byte address 0x4 - core index']
  #allocation1 [shape = 'u32[144,128]{1,0:T(1,128)}', space=vmem, size = 0x12000, scoped, tag = 'internal scratch']
  #allocation2 [shape = 'f32[37,512]{1,0:T(8,128)}', space=vmem, size = 0x14000, scoped, tag = 'scratch operand']
  #allocation3 [shape = 'f32[8,546]{1,0:T(8,128)}', space=vmem, size = 0x5000, scoped, tag = 'scratch operand']
  #allocation4 [shape = 'f32[73,512]{1,0:T(8,128)}', space=vmem, size = 0x28000, scoped, tag = 'scratch operand']
  %s0 = inlined_call_operand.vmem [shape: f32[4,546], index: 0, kind: input, shape index: {}]
  %s1 = inlined_call_operand.vmem [shape: f32[112,128], index: 1, kind: input, shape index: {}]
  %s2 = inlined_call_operand.vmem [shape: f32[2,16], index: 2, kind: output, shape index: {}]
  %s3 = sld [smem:[#allocation0]]
  $region18: #{sdf_pose_net_forward.1} parent=0
    _
  %s5 = ssub.s32 1, %s3
  %s6 = scalar_select 0, %s5, %s3
  // Predicated region
  $region2: #{sdf_pose_net_forward.1} parent=0 // pred_check
    _
  $region3: #{sdf_pose_net_forward.1} parent=0 // pred_check_branch
    %8 = sbr.rel (0) target = $region5
  $region4: #{sdf_pose_net_forward.1} parent=0 // pred_region
    _
  $region5: #{sdf_pose_net_forward.1} parent=0 // pred_fallthru
    _
  // Predicated region
  $region6: #{sdf_pose_net_forward.1} parent=0 // pred_check
    _
  $region7: #{sdf_pose_net_forward.1} parent=0 // pred_check_branch
    %10 = sbr.rel (0) target = $region9
  $region8: #{sdf_pose_net_forward.1} parent=0 // pred_region
    _
  $region9: #{sdf_pose_net_forward.1} parent=0 // pred_fallthru
    _
  %v11 = vlaneseq
  %v12 = vand.u32 %v11, 127
  %v13 = vadd.s32 %v12, 128
  %v14 = vadd.s32 %v12, 256
  %v15 = vadd.s32 %v12, 384
  %v16 = vand.u32 %v12, 15
  %v17 = vand.u32 %v13, 15
  %v18 = vand.u32 %v14, 15
  %v19 = vand.u32 %v15, 15
  %v20 = vshra.s32 %v12, 4
  %v21 = vshra.s32 %v13, 4
  %v22 = vshra.s32 %v14, 4
  %v23 = vshra.s32 %v15, 4
  %v24 = vand.u32 %v20, 15
  %v25 = vand.u32 %v21, 15
  %v26 = vand.u32 %v22, 15
  %v27 = vand.u32 %v23, 15
  %v28 = vld [vmem:[%s0] sm:$0xff]
  %v29 = vld [vmem:[%s0 + $0x8] sm:$0xff]
  %v30 = vadd.s32 %v24, 4294967295
  %v31 = vadd.s32 %v25, 4294967295
  %v32 = vadd.s32 %v26, 4294967295
  %v33 = vadd.s32 %v27, 4294967295
  %v34 = vadd.s32 %v16, 4294967295
  %v35 = vadd.s32 %v17, 4294967295
  %v36 = vadd.s32 %v18, 4294967295
  %v37 = vadd.s32 %v19, 4294967295
  %vm38 = vcmp.ge.s32.totalorder %v30, 0
  %vm39 = vcmp.ge.s32.totalorder %v31, 0
  %vm40 = vcmp.ge.s32.totalorder %v32, 0
  %vm41 = vcmp.ge.s32.totalorder %v33, 0
  %vm42 = vcmp.lt.s32.totalorder %v30, 16
  %vm43 = vcmp.lt.s32.totalorder %v31, 16
  %vm44 = vcmp.lt.s32.totalorder %v32, 16
  %vm45 = vcmp.lt.s32.totalorder %v33, 16
  %vm46 = vmand %vm38, %vm42
  %vm47 = vmand %vm39, %vm43
  %vm48 = vmand %vm40, %vm44
  %vm49 = vmand %vm41, %vm45
  %vm50 = vcmp.ge.s32.totalorder %v34, 0
  %vm51 = vcmp.ge.s32.totalorder %v35, 0
  %vm52 = vcmp.ge.s32.totalorder %v36, 0
  %vm53 = vcmp.ge.s32.totalorder %v37, 0
  %vm54 = vmand %vm46, %vm50
  %vm55 = vmand %vm47, %vm51
  %vm56 = vmand %vm48, %vm52
  %vm57 = vmand %vm49, %vm53
  %vm58 = vcmp.lt.s32.totalorder %v34, 16
  %vm59 = vcmp.lt.s32.totalorder %v35, 16
  %vm60 = vcmp.lt.s32.totalorder %v36, 16
  %vm61 = vcmp.lt.s32.totalorder %v37, 16
  %vm62 = vmand %vm54, %vm58
  %vm63 = vmand %vm55, %vm59
  %vm64 = vmand %vm56, %vm60
  %vm65 = vmand %vm57, %vm61
  %v66 = vsel %vm62, 1.0, 0.0
  %v67 = vsel %vm63, 1.0, 0.0
  %v68 = vsel %vm64, 1.0, 0.0
  %v69 = vsel %vm65, 1.0, 0.0
  %v74 = vcombine.low %v66, %v67
  %v75 = vcombine.low %v68, %v69
  %v78 = vmul.f32 %v28, %v74
  %v79 = vmul.f32 %v29, %v75
  %v82 = vcombine.high %v78, %v78
  %v83 = vcombine.high %v79, %v79
  %86 = vst [vmem:[#allocation2] sm:$0xf] %v78
  %87 = vst [vmem:[#allocation2 + $0x8] sm:$0xf] %v82
  %88 = vst [vmem:[#allocation2 + $0x10] sm:$0xf] %v79
  %89 = vst [vmem:[#allocation2 + $0x18] sm:$0xf] %v83
  %v90 = vld [vmem:[%s0] sm:$0xff]
  %v91 = vld [vmem:[%s0 + $0x8] sm:$0xff]
  %v92 = vld [vmem:[%s0 + $0x10] sm:$0xf]
  %vm93 = vcmp.ge.s32.totalorder %v16, 0
  %vm94 = vcmp.ge.s32.totalorder %v17, 0
  %vm95 = vcmp.ge.s32.totalorder %v18, 0
  %vm96 = vcmp.ge.s32.totalorder %v19, 0
  %vm97 = vmand %vm46, %vm93
  %vm98 = vmand %vm47, %vm94
  %vm99 = vmand %vm48, %vm95
  %vm100 = vmand %vm49, %vm96
  %vm101 = vcmp.lt.s32.totalorder %v16, 16
  %vm102 = vcmp.lt.s32.totalorder %v17, 16
  %vm103 = vcmp.lt.s32.totalorder %v18, 16
  %vm104 = vcmp.lt.s32.totalorder %v19, 16
  %vm105 = vmand %vm97, %vm101
  %vm106 = vmand %vm98, %vm102
  %vm107 = vmand %vm99, %vm103
  %vm108 = vmand %vm100, %vm104
  %v109 = vsel %vm105, 1.0, 0.0
  %v110 = vsel %vm106, 1.0, 0.0
  %v111 = vsel %vm107, 1.0, 0.0
  %v112 = vsel %vm108, 1.0, 0.0
  %v117 = vcombine.low %v109, %v110
  %v118 = vcombine.low %v111, %v112
  %119 = vrot.lane.b32.xlu0 %v117, 1
  %v120 = vpop.permute.xlu0 %119
  %121 = vrot.lane.b32.xlu0 %v118, 1
  %v122 = vpop.permute.xlu0 %121
  %v123 = vrot.slane %v120, 4
  %v124 = vrot.slane %v122, 4
  %vm125 = vcmask 7168
  %v126 = vsel %vm125, %v123, %v120
  %vm127 = vcmask 1043456
  %v128 = vsel %vm127, %v123, %v124
  %v129 = vsel %vm125, %v128, %v122
  %v133 = vmul.f32 %v90, %v126
  %v134 = vmul.f32 %v91, %v129
  %v135 = vmul.f32 %v92, %v124
  %v139 = vcombine.low %v133, %v133
  %v140 = vcombine.low %v134, %v134
  %v141 = vcombine.low %v135, %v135
  %142 = vrot.lane.b32.xlu0 %v139, 127
  %v143 = vpop.permute.xlu0 %142
  %144 = vrot.lane.b32.xlu0 %v133, 127
  %v145 = vpop.permute.xlu0 %144
  %146 = vrot.lane.b32.xlu0 %v140, 127
  %v147 = vpop.permute.xlu0 %146
  %148 = vrot.lane.b32.xlu0 %v134, 127
  %v149 = vpop.permute.xlu0 %148
  %150 = vrot.lane.b32.xlu0 %v141, 127
  %v151 = vpop.permute.xlu0 %150
  %vm152 = vcmask 1039360
  %v153 = vsel %vm152, %v143, %v145
  %v154 = vsel %vm152, %v145, %v147
  %v155 = vsel %vm152, %v147, %v149
  %v156 = vsel %vm152, %v149, %v151
  %161 = vst [vmem:[#allocation2] sm:$0xf0] %v153
  %162 = vst [vmem:[#allocation2 + $0x8] sm:$0xf0] %v154
  %163 = vst [vmem:[#allocation2 + $0x10] sm:$0xf0] %v155
  %164 = vst [vmem:[#allocation2 + $0x18] sm:$0xf0] %v156
  %v165 = vld [vmem:[%s0] sm:$0xff]
  %v166 = vld [vmem:[%s0 + $0x8] sm:$0xff]
  %v167 = vld [vmem:[%s0 + $0x10] sm:$0xf]
  %v168 = vadd.s32 %v16, 1
  %v169 = vadd.s32 %v17, 1
  %v170 = vadd.s32 %v18, 1
  %v171 = vadd.s32 %v19, 1
  %vm172 = vcmp.ge.s32.totalorder %v168, 0
  %vm173 = vcmp.ge.s32.totalorder %v169, 0
  %vm174 = vcmp.ge.s32.totalorder %v170, 0
  %vm175 = vcmp.ge.s32.totalorder %v171, 0
  %vm176 = vmand %vm46, %vm172
  %vm177 = vmand %vm47, %vm173
  %vm178 = vmand %vm48, %vm174
  %vm179 = vmand %vm49, %vm175
  %vm180 = vcmp.lt.s32.totalorder %v168, 16
  %vm181 = vcmp.lt.s32.totalorder %v169, 16
  %vm182 = vcmp.lt.s32.totalorder %v170, 16
  %vm183 = vcmp.lt.s32.totalorder %v171, 16
  %vm184 = vmand %vm176, %vm180
  %vm185 = vmand %vm177, %vm181
  %vm186 = vmand %vm178, %vm182
  %vm187 = vmand %vm179, %vm183
  %v188 = vsel %vm184, 1.0, 0.0
  %v189 = vsel %vm185, 1.0, 0.0
  %v190 = vsel %vm186, 1.0, 0.0
  %v191 = vsel %vm187, 1.0, 0.0
  %v196 = vcombine.low %v188, %v189
  %v197 = vcombine.low %v190, %v191
  %198 = vrot.lane.b32.xlu0 %v196, 2
  %v199 = vpop.permute.xlu0 %198
  %200 = vrot.lane.b32.xlu0 %v197, 2
  %v201 = vpop.permute.xlu0 %200
  %v202 = vrot.slane %v199, 4
  %v203 = vrot.slane %v201, 4
  %vm204 = vcmask 15360
  %v205 = vsel %vm204, %v202, %v199
  %v206 = vsel %vm127, %v202, %v203
  %v207 = vsel %vm204, %v206, %v201
  %v211 = vmul.f32 %v165, %v205
  %v212 = vmul.f32 %v166, %v207
  %v213 = vmul.f32 %v167, %v203
  %v217 = vcombine.high %v211, %v211
  %v218 = vcombine.high %v212, %v212
  %219 = vrot.lane.b32.xlu0 %v211, 126
  %v220 = vpop.permute.xlu0 %219
  %221 = vrot.lane.b32.xlu0 %v217, 126
  %v222 = vpop.permute.xlu0 %221
  %223 = vrot.lane.b32.xlu0 %v212, 126
  %v224 = vpop.permute.xlu0 %223
  %225 = vrot.lane.b32.xlu0 %v218, 126
  %v226 = vpop.permute.xlu0 %225
  %227 = vrot.lane.b32.xlu0 %v213, 126
  %v228 = vpop.permute.xlu0 %227
  %vm229 = vcmask 1031168
  %v230 = vsel %vm229, %v220, %v222
  %v231 = vsel %vm229, %v222, %v224
  %v232 = vsel %vm229, %v224, %v226
  %v233 = vsel %vm229, %v226, %v228
  %238 = vst [vmem:[#allocation2 + $0x20] sm:$0xf] %v230
  %239 = vst [vmem:[#allocation2 + $0x28] sm:$0xf] %v231
  %240 = vst [vmem:[#allocation2 + $0x30] sm:$0xf] %v232
  %241 = vst [vmem:[#allocation2 + $0x38] sm:$0xf] %v233
  %v242 = vld [vmem:[%s0] sm:$0xff]
  %v243 = vld [vmem:[%s0 + $0x8] sm:$0xff]
  %v244 = vld [vmem:[%s0 + $0x10] sm:$0xf]
  %vm245 = vcmp.ge.s32.totalorder %v24, 0
  %vm246 = vcmp.ge.s32.totalorder %v25, 0
  %vm247 = vcmp.ge.s32.totalorder %v26, 0
  %vm248 = vcmp.ge.s32.totalorder %v27, 0
  %vm249 = vcmp.lt.s32.totalorder %v24, 16
  %vm250 = vcmp.lt.s32.totalorder %v25, 16
  %vm251 = vcmp.lt.s32.totalorder %v26, 16
  %vm252 = vcmp.lt.s32.totalorder %v27, 16
  %vm253 = vmand %vm245, %vm249
  %vm254 = vmand %vm246, %vm250
  %vm255 = vmand %vm247, %vm251
  %vm256 = vmand %vm248, %vm252
  %vm257 = vmand %vm253, %vm50
  %vm258 = vmand %vm254, %vm51
  %vm259 = vmand %vm255, %vm52
  %vm260 = vmand %vm256, %vm53
  %vm261 = vmand %vm257, %vm58
  %vm262 = vmand %vm258, %vm59
  %vm263 = vmand %vm259, %vm60
  %vm264 = vmand %vm260, %vm61
  %v265 = vsel %vm261, 1.0, 0.0
  %v266 = vsel %vm262, 1.0, 0.0
  %v267 = vsel %vm263, 1.0, 0.0
  %v268 = vsel %vm264, 1.0, 0.0
  %v273 = vcombine.low %v265, %v266
  %v274 = vcombine.low %v267, %v268
  %275 = vrot.lane.b32.xlu0 %v273, 16
  %v276 = vpop.permute.xlu0 %275
  %277 = vrot.lane.b32.xlu0 %v274, 16
  %v278 = vpop.permute.xlu0 %277
  %v279 = vrot.slane %v276, 4
  %v280 = vrot.slane %v278, 4
  %vm281 = vcmask 130048
  %v282 = vsel %vm281, %v279, %v276
  %v283 = vsel %vm127, %v279, %v280
  %v284 = vsel %vm281, %v283, %v278
  %v288 = vmul.f32 %v242, %v282
  %v289 = vmul.f32 %v243, %v284
  %v290 = vmul.f32 %v244, %v280
  %v294 = vcombine.low %v288, %v288
  %v295 = vcombine.low %v289, %v289
  %v296 = vcombine.low %v290, %v290
  %297 = vrot.lane.b32.xlu0 %v294, 112
  %v298 = vpop.permute.xlu0 %297
  %299 = vrot.lane.b32.xlu0 %v288, 112
  %v300 = vpop.permute.xlu0 %299
  %301 = vrot.lane.b32.xlu0 %v295, 112
  %v302 = vpop.permute.xlu0 %301
  %303 = vrot.lane.b32.xlu0 %v289, 112
  %v304 = vpop.permute.xlu0 %303
  %305 = vrot.lane.b32.xlu0 %v296, 112
  %v306 = vpop.permute.xlu0 %305
  %vm307 = vcmask 916480
  %v308 = vsel %vm307, %v298, %v300
  %v309 = vsel %vm307, %v300, %v302
  %v310 = vsel %vm307, %v302, %v304
  %v311 = vsel %vm307, %v304, %v306
  %316 = vst [vmem:[#allocation2 + $0x20] sm:$0xf0] %v308
  %317 = vst [vmem:[#allocation2 + $0x28] sm:$0xf0] %v309
  %318 = vst [vmem:[#allocation2 + $0x30] sm:$0xf0] %v310
  %319 = vst [vmem:[#allocation2 + $0x38] sm:$0xf0] %v311
  %v320 = vld [vmem:[%s0] sm:$0xff]
  %v321 = vld [vmem:[%s0 + $0x8] sm:$0xff]
  %v322 = vld [vmem:[%s0 + $0x10] sm:$0xf]
  %vm323 = vmand %vm253, %vm93
  %vm324 = vmand %vm254, %vm94
  %vm325 = vmand %vm255, %vm95
  %vm326 = vmand %vm256, %vm96
  %vm327 = vmand %vm323, %vm101
  %vm328 = vmand %vm324, %vm102
  %vm329 = vmand %vm325, %vm103
  %vm330 = vmand %vm326, %vm104
  %v331 = vsel %vm327, 1.0, 0.0
  %v332 = vsel %vm328, 1.0, 0.0
  %v333 = vsel %vm329, 1.0, 0.0
  %v334 = vsel %vm330, 1.0, 0.0
  %v339 = vcombine.low %v331, %v332
  %v340 = vcombine.low %v333, %v334
  %341 = vrot.lane.b32.xlu0 %v339, 17
  %v342 = vpop.permute.xlu0 %341
  %343 = vrot.lane.b32.xlu0 %v340, 17
  %v344 = vpop.permute.xlu0 %343
  %v345 = vrot.slane %v342, 4
  %v346 = vrot.slane %v344, 4
  %vm347 = vcmask 138240
  %v348 = vsel %vm347, %v345, %v342
  %v349 = vsel %vm127, %v345, %v346
  %v350 = vsel %vm347, %v349, %v344
  %v354 = vmul.f32 %v320, %v348
  %v355 = vmul.f32 %v321, %v350
  %v356 = vmul.f32 %v322, %v346
  %v360 = vcombine.high %v354, %v354
  %v361 = vcombine.high %v355, %v355
  %362 = vrot.lane.b32.xlu0 %v354, 111
  %v363 = vpop.permute.xlu0 %362
  %364 = vrot.lane.b32.xlu0 %v360, 111
  %v365 = vpop.permute.xlu0 %364
  %366 = vrot.lane.b32.xlu0 %v355, 111
  %v367 = vpop.permute.xlu0 %366
  %368 = vrot.lane.b32.xlu0 %v361, 111
  %v369 = vpop.permute.xlu0 %368
  %370 = vrot.lane.b32.xlu0 %v356, 111
  %v371 = vpop.permute.xlu0 %370
  %vm372 = vcmask 908288
  %v373 = vsel %vm372, %v363, %v365
  %v374 = vsel %vm372, %v365, %v367
  %v375 = vsel %vm372, %v367, %v369
  %v376 = vsel %vm372, %v369, %v371
  %381 = vst [vmem:[#allocation2 + $0x40] sm:$0xf] %v373
  %382 = vst [vmem:[#allocation2 + $0x48] sm:$0xf] %v374
  %383 = vst [vmem:[#allocation2 + $0x50] sm:$0xf] %v375
  %384 = vst [vmem:[#allocation2 + $0x58] sm:$0xf] %v376
  %v385 = vld [vmem:[%s0] sm:$0xff]
  %v386 = vld [vmem:[%s0 + $0x8] sm:$0xff]
  %v387 = vld [vmem:[%s0 + $0x10] sm:$0xf]
  %vm388 = vmand %vm253, %vm172
  %vm389 = vmand %vm254, %vm173
  %vm390 = vmand %vm255, %vm174
  %vm391 = vmand %vm256, %vm175
  %vm392 = vmand %vm388, %vm180
  %vm393 = vmand %vm389, %vm181
  %vm394 = vmand %vm390, %vm182
  %vm395 = vmand %vm391, %vm183
  %v396 = vsel %vm392, 1.0, 0.0
  %v397 = vsel %vm393, 1.0, 0.0
  %v398 = vsel %vm394, 1.0, 0.0
  %v399 = vsel %vm395, 1.0, 0.0
  %v404 = vcombine.low %v396, %v397
  %v405 = vcombine.low %v398, %v399
  %406 = vrot.lane.b32.xlu0 %v404, 18
  %v407 = vpop.permute.xlu0 %406
  %408 = vrot.lane.b32.xlu0 %v405, 18
  %v409 = vpop.permute.xlu0 %408
  %v410 = vrot.slane %v407, 4
  %v411 = vrot.slane %v409, 4
  %vm412 = vcmask 146432
  %v413 = vsel %vm412, %v410, %v407
  %v414 = vsel %vm127, %v410, %v411
  %v415 = vsel %vm412, %v414, %v409
  %v419 = vmul.f32 %v385, %v413
  %v420 = vmul.f32 %v386, %v415
  %v421 = vmul.f32 %v387, %v411
  %v425 = vcombine.low %v419, %v419
  %v426 = vcombine.low %v420, %v420
  %v427 = vcombine.low %v421, %v421
  %428 = vrot.lane.b32.xlu0 %v425, 110
  %v429 = vpop.permute.xlu0 %428
  %430 = vrot.lane.b32.xlu0 %v419, 110
  %v431 = vpop.permute.xlu0 %430
  %432 = vrot.lane.b32.xlu0 %v426, 110
  %v433 = vpop.permute.xlu0 %432
  %434 = vrot.lane.b32.xlu0 %v420, 110
  %v435 = vpop.permute.xlu0 %434
  %436 = vrot.lane.b32.xlu0 %v427, 110
  %v437 = vpop.permute.xlu0 %436
  %vm438 = vcmask 900096
  %v439 = vsel %vm438, %v429, %v431
  %v440 = vsel %vm438, %v431, %v433
  %v441 = vsel %vm438, %v433, %v435
  %v442 = vsel %vm438, %v435, %v437
  %447 = vst [vmem:[#allocation2 + $0x40] sm:$0xf0] %v439
  %448 = vst [vmem:[#allocation2 + $0x48] sm:$0xf0] %v440
  %449 = vst [vmem:[#allocation2 + $0x50] sm:$0xf0] %v441
  %450 = vst [vmem:[#allocation2 + $0x58] sm:$0xf0] %v442
  %v451 = vld [vmem:[%s0] sm:$0xff]
  %v452 = vld [vmem:[%s0 + $0x8] sm:$0xff]
  %v453 = vld [vmem:[%s0 + $0x10] sm:$0xf]
  %v454 = vadd.s32 %v24, 1
  %v455 = vadd.s32 %v25, 1
  %v456 = vadd.s32 %v26, 1
  %v457 = vadd.s32 %v27, 1
  %vm458 = vcmp.ge.s32.totalorder %v454, 0
  %vm459 = vcmp.ge.s32.totalorder %v455, 0
  %vm460 = vcmp.ge.s32.totalorder %v456, 0
  %vm461 = vcmp.ge.s32.totalorder %v457, 0
  %vm462 = vcmp.lt.s32.totalorder %v454, 16
  %vm463 = vcmp.lt.s32.totalorder %v455, 16
  %vm464 = vcmp.lt.s32.totalorder %v456, 16
  %vm465 = vcmp.lt.s32.totalorder %v457, 16
  %vm466 = vmand %vm458, %vm462
  %vm467 = vmand %vm459, %vm463
  %vm468 = vmand %vm460, %vm464
  %vm469 = vmand %vm461, %vm465
  %vm470 = vmand %vm466, %vm50
  %vm471 = vmand %vm467, %vm51
  %vm472 = vmand %vm468, %vm52
  %vm473 = vmand %vm469, %vm53
  %vm474 = vmand %vm470, %vm58
  %vm475 = vmand %vm471, %vm59
  %vm476 = vmand %vm472, %vm60
  %vm477 = vmand %vm473, %vm61
  %v478 = vsel %vm474, 1.0, 0.0
  %v479 = vsel %vm475, 1.0, 0.0
  %v480 = vsel %vm476, 1.0, 0.0
  %v481 = vsel %vm477, 1.0, 0.0
  %v486 = vcombine.low %v478, %v479
  %v487 = vcombine.low %v480, %v481
  %488 = vrot.lane.b32.xlu0 %v486, 32
  %v489 = vpop.permute.xlu0 %488
  %490 = vrot.lane.b32.xlu0 %v487, 32
  %v491 = vpop.permute.xlu0 %490
  %v492 = vrot.slane %v489, 4
  %v493 = vrot.slane %v491, 4
  %vm494 = vcmask 261120
  %v495 = vsel %vm494, %v492, %v489
  %v496 = vsel %vm127, %v492, %v493
  %v497 = vsel %vm494, %v496, %v491
  %v501 = vmul.f32 %v451, %v495
  %v502 = vmul.f32 %v452, %v497
  %v503 = vmul.f32 %v453, %v493
  %v507 = vcombine.high %v501, %v501
  %v508 = vcombine.high %v502, %v502
  %509 = vrot.lane.b32.xlu0 %v501, 96
  %v510 = vpop.permute.xlu0 %509
  %511 = vrot.lane.b32.xlu0 %v507, 96
  %v512 = vpop.permute.xlu0 %511
  %513 = vrot.lane.b32.xlu0 %v502, 96
  %v514 = vpop.permute.xlu0 %513
  %515 = vrot.lane.b32.xlu0 %v508, 96
  %v516 = vpop.permute.xlu0 %515
  %517 = vrot.lane.b32.xlu0 %v503, 96
  %v518 = vpop.permute.xlu0 %517
  %vm519 = vcmask 785408
  %v520 = vsel %vm519, %v510, %v512
  %v521 = vsel %vm519, %v512, %v514
  %v522 = vsel %vm519, %v514, %v516
  %v523 = vsel %vm519, %v516, %v518
  %528 = vst [vmem:[#allocation2 + $0x60] sm:$0xf] %v520
  %529 = vst [vmem:[#allocation2 + $0x68] sm:$0xf] %v521
  %530 = vst [vmem:[#allocation2 + $0x70] sm:$0xf] %v522
  %531 = vst [vmem:[#allocation2 + $0x78] sm:$0xf] %v523
  %v532 = vld [vmem:[%s0] sm:$0xff]
  %v533 = vld [vmem:[%s0 + $0x8] sm:$0xff]
  %v534 = vld [vmem:[%s0 + $0x10] sm:$0xf]
  %vm535 = vmand %vm466, %vm93
  %vm536 = vmand %vm467, %vm94
  %vm537 = vmand %vm468, %vm95
  %vm538 = vmand %vm469, %vm96
  %vm539 = vmand %vm535, %vm101
  %vm540 = vmand %vm536, %vm102
  %vm541 = vmand %vm537, %vm103
  %vm542 = vmand %vm538, %vm104
  %v543 = vsel %vm539, 1.0, 0.0
  %v544 = vsel %vm540, 1.0, 0.0
  %v545 = vsel %vm541, 1.0, 0.0
  %v546 = vsel %vm542, 1.0, 0.0
  %v551 = vcombine.low %v543, %v544
  %v552 = vcombine.low %v545, %v546
  %553 = vrot.lane.b32.xlu0 %v551, 33
  %v554 = vpop.permute.xlu0 %553
  %555 = vrot.lane.b32.xlu0 %v552, 33
  %v556 = vpop.permute.xlu0 %555
  %v557 = vrot.slane %v554, 4
  %v558 = vrot.slane %v556, 4
  %vm559 = vcmask 269312
  %v560 = vsel %vm559, %v557, %v554
  %v561 = vsel %vm127, %v557, %v558
  %v562 = vsel %vm559, %v561, %v556
  %v566 = vmul.f32 %v532, %v560
  %v567 = vmul.f32 %v533, %v562
  %v568 = vmul.f32 %v534, %v558
  %v572 = vcombine.low %v566, %v566
  %v573 = vcombine.low %v567, %v567
  %v574 = vcombine.low %v568, %v568
  %575 = vrot.lane.b32.xlu0 %v572, 95
  %v576 = vpop.permute.xlu0 %575
  %577 = vrot.lane.b32.xlu0 %v566, 95
  %v578 = vpop.permute.xlu0 %577
  %579 = vrot.lane.b32.xlu0 %v573, 95
  %v580 = vpop.permute.xlu0 %579
  %581 = vrot.lane.b32.xlu0 %v567, 95
  %v582 = vpop.permute.xlu0 %581
  %583 = vrot.lane.b32.xlu0 %v574, 95
  %v584 = vpop.permute.xlu0 %583
  %vm585 = vcmask 777216
  %v586 = vsel %vm585, %v576, %v578
  %v587 = vsel %vm585, %v578, %v580
  %v588 = vsel %vm585, %v580, %v582
  %v589 = vsel %vm585, %v582, %v584
  %594 = vst [vmem:[#allocation2 + $0x60] sm:$0xf0] %v586
  %595 = vst [vmem:[#allocation2 + $0x68] sm:$0xf0] %v587
  %596 = vst [vmem:[#allocation2 + $0x70] sm:$0xf0] %v588
  %597 = vst [vmem:[#allocation2 + $0x78] sm:$0xf0] %v589
  %v598 = vld [vmem:[%s0] sm:$0xff]
  %v599 = vld [vmem:[%s0 + $0x8] sm:$0xff]
  %v600 = vld [vmem:[%s0 + $0x10] sm:$0xf]
  %vm601 = vmand %vm466, %vm172
  %vm602 = vmand %vm467, %vm173
  %vm603 = vmand %vm468, %vm174
  %vm604 = vmand %vm469, %vm175
  %vm605 = vmand %vm601, %vm180
  %vm606 = vmand %vm602, %vm181
  %vm607 = vmand %vm603, %vm182
  %vm608 = vmand %vm604, %vm183
  %v609 = vsel %vm605, 1.0, 0.0
  %v610 = vsel %vm606, 1.0, 0.0
  %v611 = vsel %vm607, 1.0, 0.0
  %v612 = vsel %vm608, 1.0, 0.0
  %v617 = vcombine.low %v609, %v610
  %v618 = vcombine.low %v611, %v612
  %619 = vrot.lane.b32.xlu0 %v617, 34
  %v620 = vpop.permute.xlu0 %619
  %621 = vrot.lane.b32.xlu0 %v618, 34
  %v622 = vpop.permute.xlu0 %621
  %v623 = vrot.slane %v620, 4
  %v624 = vrot.slane %v622, 4
  %vm625 = vcmask 277504
  %v626 = vsel %vm625, %v623, %v620
  %v627 = vsel %vm127, %v623, %v624
  %v628 = vsel %vm625, %v627, %v622
  %v632 = vmul.f32 %v598, %v626
  %v633 = vmul.f32 %v599, %v628
  %v634 = vmul.f32 %v600, %v624
  %v638 = vcombine.high %v632, %v632
  %v639 = vcombine.high %v633, %v633
  %640 = vrot.lane.b32.xlu0 %v632, 94
  %v641 = vpop.permute.xlu0 %640
  %642 = vrot.lane.b32.xlu0 %v638, 94
  %v643 = vpop.permute.xlu0 %642
  %644 = vrot.lane.b32.xlu0 %v633, 94
  %v645 = vpop.permute.xlu0 %644
  %646 = vrot.lane.b32.xlu0 %v639, 94
  %v647 = vpop.permute.xlu0 %646
  %648 = vrot.lane.b32.xlu0 %v634, 94
  %v649 = vpop.permute.xlu0 %648
  %vm650 = vcmask 769024
  %v651 = vsel %vm650, %v641, %v643
  %v652 = vsel %vm650, %v643, %v645
  %v653 = vsel %vm650, %v645, %v647
  %v654 = vsel %vm650, %v647, %v649
  %659 = vst [vmem:[#allocation2 + $0x80] sm:$0xf] %v651
  %660 = vst [vmem:[#allocation2 + $0x88] sm:$0xf] %v652
  %661 = vst [vmem:[#allocation2 + $0x90] sm:$0xf] %v653
  %662 = vst [vmem:[#allocation2 + $0x98] sm:$0xf] %v654
  %v663 = vlaneseq
  %vm664 = vcmp.ge.s32.totalorder %v663, 0
  %vm665 = vcmp.lt.s32.totalorder %v663, 512
  %vm666 = vmand %vm664, %vm665
  %s667 = scalar_lea.vmem [#allocation2], 132
  %668 = vst.msk [vmem:[%s667] ss:$8 sm:$0xf] %vm666, 1.0
  %669 = vst.msk [vmem:[%s667] ss:$8 sm:$0x0] %vm666, 1.0
  %v670 = vld [vmem:[%s1] sm:$0xff]
  %v671 = vld [vmem:[#allocation2] sm:$0xff]
  %v672 = vld [vmem:[#allocation2 + $0x8] sm:$0xff]
  %v673 = vld [vmem:[#allocation2 + $0x10] sm:$0xff]
  %v674 = vld [vmem:[#allocation2 + $0x18] sm:$0xff]
  %v675 = vld [vmem:[#allocation2 + $0x20] sm:$0xff]
  %v676 = vld [vmem:[#allocation2 + $0x28] sm:$0xff]
  %v677 = vld [vmem:[#allocation2 + $0x30] sm:$0xff]
  %v678 = vld [vmem:[#allocation2 + $0x38] sm:$0xff]
  %v679 = vld [vmem:[#allocation2 + $0x40] sm:$0xff]
  %v680 = vld [vmem:[#allocation2 + $0x48] sm:$0xff]
  %v681 = vld [vmem:[#allocation2 + $0x50] sm:$0xff]
  %v682 = vld [vmem:[#allocation2 + $0x58] sm:$0xff]
  %v683 = vld [vmem:[#allocation2 + $0x60] sm:$0xff]
  %v684 = vld [vmem:[#allocation2 + $0x68] sm:$0xff]
  %v685 = vld [vmem:[#allocation2 + $0x70] sm:$0xff]
  %v686 = vld [vmem:[#allocation2 + $0x78] sm:$0xff]
  %v687 = vld [vmem:[#allocation2 + $0x80] sm:$0x1f]
  %v688 = vld [vmem:[#allocation2 + $0x88] sm:$0x1f]
  %v689 = vld [vmem:[#allocation2 + $0x90] sm:$0x1f]
  %v690 = vld [vmem:[#allocation2 + $0x98] sm:$0x1f]
  %vm691 = vcmask 302080
  %v693 = vsel %vm691, %v670, 0
  %vm695 = vcmask 1044480
  %v697 = vsel %vm695, %v687, 0
  %v700 = vsel %vm695, %v688, 0
  %v703 = vsel %vm695, %v689, 0
  %v706 = vsel %vm695, %v690, 0
  %708 = vmatprep.subr.mxu0 %v672
  %709 = vmatpush1.msra.mxu0 %v671
  %710 = vmatprep.subr.mxu0 %v676
  %711 = vmatpush1.msra.mxu0 %v675
  %712 = vmatprep.subr.mxu0 %v680
  %713 = vmatpush1.msra.mxu0 %v679
  %714 = vmatprep.subr.mxu0 %v684
  %715 = vmatpush1.msra.mxu0 %v683
  %716 = vmatprep.subr.mxu0 %v700
  %717 = vmatpush1.msra.mxu0 %v697
  %718 = vmatprep.subr.mxu0 0.0
  %719 = vmatpush1.msra.mxu0 0.0
  %720 = vmatprep.subr.mxu0 0.0
  %721 = vmatpush1.msra.mxu0 0.0
  %722 = vmatprep.subr.mxu0 0.0
  %723 = vmatpush1.msra.mxu0 0.0
  %724 = vmatprep.subr.mxu0 0.0
  %725 = vmatpush1.msra.mxu0 0.0
  %726 = vmatprep.subr.mxu0 0.0
  %727 = vmatpush1.msra.mxu0 0.0
  %728 = vmatprep.subr.mxu0 0.0
  %729 = vmatpush1.msra.mxu0 0.0
  %730 = vmatprep.subr.mxu0 0.0
  %731 = vmatpush1.msra.mxu0 0.0
  %732 = vmatprep.subr.mxu0 0.0
  %733 = vmatpush1.msra.mxu0 0.0
  %734 = vmatprep.subr.mxu0 0.0
  %735 = vmatpush1.msra.mxu0 0.0
  %736 = vmatprep.subr.mxu0 0.0
  %737 = vmatpush1.msra.mxu0 0.0
  %738 = vmatprep.subr.mxu0 0.0
  %739 = vmatpush1.msra.mxu0 0.0
  %740 = vmatprep.subr.mxu0 0.0
  %741 = vmatpush1.msra.mxu0 0.0
  %742 = vmatprep.subr.mxu0 0.0
  %743 = vmatpush1.msra.mxu0 0.0
  %744 = vmatprep.subr.mxu0 0.0
  %745 = vmatpush1.msra.mxu0 0.0
  %746 = vmatprep.subr.mxu0 0.0
  %747 = vmatpush1.msra.mxu0 0.0
  %748 = vmatprep.subr.mxu0 0.0
  %749 = vmatpush1.msra.mxu0 0.0
  %750 = vmatprep.subr.mxu0 0.0
  %751 = vmatpush1.msra.mxu0 0.0
  %752 = vmatprep.subr.mxu0 0.0
  %753 = vmatpush1.msra.mxu0 0.0
  %754 = vmatprep.subr.mxu0 0.0
  %755 = vmatpush1.msra.mxu0 0.0
  %756 = vmatprep.subr.mxu0 0.0
  %757 = vmatpush1.msra.mxu0 0.0
  %758 = vmatprep.subr.mxu0 0.0
  %759 = vmatpush1.msra.mxu0 0.0
  %760 = vmatprep.subr.mxu0 0.0
  %761 = vmatpush1.msra.mxu0 0.0
  %762 = vmatprep.subr.mxu0 0.0
  %763 = vmatpush1.msra.mxu0 0.0
  %764 = vmatprep.subr.mxu0 0.0
  %765 = vmatpush1.msra.mxu0 0.0
  %766 = vmatprep.subr.mxu0 0.0
  %767 = vmatpush1.msra.mxu0 0.0
  %768 = vmatprep.subr.mxu0 0.0
  %769 = vmatpush1.msra.mxu0 0.0
  %770 = vmatprep.subr.mxu0 0.0
  %771 = vmatpush1.msra.mxu0 0.0
  %772 = vmatprep.mubr.f32.mxu0 0.0
  %773 = vmatmul.mubr.f32.gmra.mrb[0].mxu0 %v693
  %v774 = vpop.f32.mrb[0].mxu0
  %v775 = vadd.f32 0.0, %v774
  %v776 = vpop.f32.mrb[0].mxu0
  %v777 = vadd.f32 0.0, %v776
  %778 = vdwg.mxu0
  %779 = vmatprep.subr.mxu0 %v674
  %780 = vmatpush1.msra.mxu0 %v673
  %781 = vmatprep.subr.mxu0 %v678
  %782 = vmatpush1.msra.mxu0 %v677
  %783 = vmatprep.subr.mxu0 %v682
  %784 = vmatpush1.msra.mxu0 %v681
  %785 = vmatprep.subr.mxu0 %v686
  %786 = vmatpush1.msra.mxu0 %v685
  %787 = vmatprep.subr.mxu0 %v706
  %788 = vmatpush1.msra.mxu0 %v703
  %789 = vmatprep.subr.mxu0 0.0
  %790 = vmatpush1.msra.mxu0 0.0
  %791 = vmatprep.subr.mxu0 0.0
  %792 = vmatpush1.msra.mxu0 0.0
  %793 = vmatprep.subr.mxu0 0.0
  %794 = vmatpush1.msra.mxu0 0.0
  %795 = vmatprep.subr.mxu0 0.0
  %796 = vmatpush1.msra.mxu0 0.0
  %797 = vmatprep.subr.mxu0 0.0
  %798 = vmatpush1.msra.mxu0 0.0
  %799 = vmatprep.subr.mxu0 0.0
  %800 = vmatpush1.msra.mxu0 0.0
  %801 = vmatprep.subr.mxu0 0.0
  %802 = vmatpush1.msra.mxu0 0.0
  %803 = vmatprep.subr.mxu0 0.0
  %804 = vmatpush1.msra.mxu0 0.0
  %805 = vmatprep.subr.mxu0 0.0
  %806 = vmatpush1.msra.mxu0 0.0
  %807 = vmatprep.subr.mxu0 0.0
  %808 = vmatpush1.msra.mxu0 0.0
  %809 = vmatprep.subr.mxu0 0.0
  %810 = vmatpush1.msra.mxu0 0.0
  %811 = vmatprep.subr.mxu0 0.0
  %812 = vmatpush1.msra.mxu0 0.0
  %813 = vmatprep.subr.mxu0 0.0
  %814 = vmatpush1.msra.mxu0 0.0
  %815 = vmatprep.subr.mxu0 0.0
  %816 = vmatpush1.msra.mxu0 0.0
  %817 = vmatprep.subr.mxu0 0.0
  %818 = vmatpush1.msra.mxu0 0.0
  %819 = vmatprep.subr.mxu0 0.0
  %820 = vmatpush1.msra.mxu0 0.0
  %821 = vmatprep.subr.mxu0 0.0
  %822 = vmatpush1.msra.mxu0 0.0
  %823 = vmatprep.subr.mxu0 0.0
  %824 = vmatpush1.msra.mxu0 0.0
  %825 = vmatprep.subr.mxu0 0.0
  %826 = vmatpush1.msra.mxu0 0.0
  %827 = vmatprep.subr.mxu0 0.0
  %828 = vmatpush1.msra.mxu0 0.0
  %829 = vmatprep.subr.mxu0 0.0
  %830 = vmatpush1.msra.mxu0 0.0
  %831 = vmatprep.subr.mxu0 0.0
  %832 = vmatpush1.msra.mxu0 0.0
  %833 = vmatprep.subr.mxu0 0.0
  %834 = vmatpush1.msra.mxu0 0.0
  %835 = vmatprep.subr.mxu0 0.0
  %836 = vmatpush1.msra.mxu0 0.0
  %837 = vmatprep.subr.mxu0 0.0
  %838 = vmatpush1.msra.mxu0 0.0
  %839 = vmatprep.subr.mxu0 0.0
  %840 = vmatpush1.msra.mxu0 0.0
  %841 = vmatprep.subr.mxu0 0.0
  %842 = vmatpush1.msra.mxu0 0.0
  %843 = vmatprep.mubr.f32.mxu0 0.0
  %844 = vmatmul.mubr.f32.gmra.mrb[0].mxu0 %v693
  %v845 = vpop.f32.mrb[0].mxu0
  %v846 = vadd.f32 0.0, %v845
  %v847 = vpop.f32.mrb[0].mxu0
  %v848 = vadd.f32 0.0, %v847
  %849 = vdwg.mxu0
  %v850 = vmax.f32 %v775, 0.0
  %v851 = vmax.f32 %v777, 0.0
  %v852 = vmax.f32 %v846, 0.0
  %v853 = vmax.f32 %v848, 0.0
  %854 = vst.msk [vmem:[#allocation3] sm:$0xff] %vm347, 0.0
  %vm855 = vcmask 277640
  %856 = vst.msk [vmem:[#allocation3 + $0x20] sm:$0xff] %vm855, 0.0
  %861 = vrot.lane.b32.xlu0 %v850, 17
  %v862 = vpop.permute.xlu0 %861
  %863 = vrot.lane.b32.xlu0 %v851, 17
  %v864 = vpop.permute.xlu0 %863
  %865 = vrot.lane.b32.xlu0 %v852, 17
  %v866 = vpop.permute.xlu0 %865
  %867 = vrot.lane.b32.xlu0 %v853, 17
  %v868 = vpop.permute.xlu0 %867
  %v869 = vsel %vm347, %v862, %v864
  %v870 = vsel %vm347, %v864, %v866
  %v871 = vsel %vm347, %v866, %v868
  %vm877 = vcmask 1047688
  %878 = vst.msk [vmem:[#allocation3] sm:$0xff] %vm877, %v862
  %879 = vst [vmem:[#allocation3 + $0x8] sm:$0xff] %v869
  %880 = vst [vmem:[#allocation3 + $0x10] sm:$0xff] %v870
  %881 = vst [vmem:[#allocation3 + $0x18] sm:$0xff] %v871
  %882 = vst.msk [vmem:[#allocation3 + $0x20] sm:$0xff] %vm347, %v868
  %v883 = vld [vmem:[#allocation3] sm:$0xff]
  %v884 = vld [vmem:[#allocation3 + $0x8] sm:$0xff]
  %v885 = vld [vmem:[#allocation3 + $0x10] sm:$0xff]
  %v886 = vld [vmem:[#allocation3 + $0x18] sm:$0xff]
  %v887 = vmul.f32 %v883, %v66
  %v888 = vmul.f32 %v884, %v67
  %v889 = vmul.f32 %v885, %v68
  %v890 = vmul.f32 %v886, %v69
  %891 = vst [vmem:[#allocation4] sm:$0xff] %v887
  %892 = vst [vmem:[#allocation4 + $0x8] sm:$0xff] %v888
  %893 = vst [vmem:[#allocation4 + $0x10] sm:$0xff] %v889
  %894 = vst [vmem:[#allocation4 + $0x18] sm:$0xff] %v890
  %v895 = vld [vmem:[#allocation3] sm:$0xff]
  %v896 = vld [vmem:[#allocation3 + $0x8] sm:$0xff]
  %v897 = vld [vmem:[#allocation3 + $0x10] sm:$0xff]
  %v898 = vld [vmem:[#allocation3 + $0x18] sm:$0xff]
  %v899 = vld [vmem:[#allocation3 + $0x20] sm:$0xff]
  %900 = vrot.lane.b32.xlu0 %v109, 1
  %v901 = vpop.permute.xlu0 %900
  %902 = vrot.lane.b32.xlu0 %v110, 1
  %v903 = vpop.permute.xlu0 %902
  %904 = vrot.lane.b32.xlu0 %v111, 1
  %v905 = vpop.permute.xlu0 %904
  %906 = vrot.lane.b32.xlu0 %v112, 1
  %v907 = vpop.permute.xlu0 %906
  %v908 = vsel %vm125, %v901, %v903
  %v909 = vsel %vm125, %v903, %v905
  %v910 = vsel %vm125, %v905, %v907
  %v916 = vmul.f32 %v895, %v901
  %v917 = vmul.f32 %v896, %v908
  %v918 = vmul.f32 %v897, %v909
  %v919 = vmul.f32 %v898, %v910
  %v920 = vmul.f32 %v899, %v907
  %926 = vrot.lane.b32.xlu0 %v916, 127
  %v927 = vpop.permute.xlu0 %926
  %928 = vrot.lane.b32.xlu0 %v917, 127
  %v929 = vpop.permute.xlu0 %928
  %930 = vrot.lane.b32.xlu0 %v918, 127
  %v931 = vpop.permute.xlu0 %930
  %932 = vrot.lane.b32.xlu0 %v919, 127
  %v933 = vpop.permute.xlu0 %932
  %934 = vrot.lane.b32.xlu0 %v920, 127
  %v935 = vpop.permute.xlu0 %934
  %v936 = vsel %vm152, %v927, %v929
  %v937 = vsel %vm152, %v929, %v931
  %v938 = vsel %vm152, %v931, %v933
  %v939 = vsel %vm152, %v933, %v935
  %944 = vst [vmem:[#allocation4 + $0x20] sm:$0xff] %v936
  %945 = vst [vmem:[#allocation4 + $0x28] sm:$0xff] %v937
  %946 = vst [vmem:[#allocation4 + $0x30] sm:$0xff] %v938
  %947 = vst [vmem:[#allocation4 + $0x38] sm:$0xff] %v939
  %v948 = vld [vmem:[#allocation3] sm:$0xff]
  %v949 = vld [vmem:[#allocation3 + $0x8] sm:$0xff]
  %v950 = vld [vmem:[#allocation3 + $0x10] sm:$0xff]
  %v951 = vld [vmem:[#allocation3 + $0x18] sm:$0xff]
  %v952 = vld [vmem:[#allocation3 + $0x20] sm:$0xff]
  %953 = vrot.lane.b32.xlu0 %v188, 2
  %v954 = vpop.permute.xlu0 %953
  %955 = vrot.lane.b32.xlu0 %v189, 2
  %v956 = vpop.permute.xlu0 %955
  %957 = vrot.lane.b32.xlu0 %v190, 2
  %v958 = vpop.permute.xlu0 %957
  %959 = vrot.lane.b32.xlu0 %v191, 2
  %v960 = vpop.permute.xlu0 %959
  %v961 = vsel %vm204, %v954, %v956
  %v962 = vsel %vm204, %v956, %v958
  %v963 = vsel %vm204, %v958, %v960
  %v969 = vmul.f32 %v948, %v954
  %v970 = vmul.f32 %v949, %v961
  %v971 = vmul.f32 %v950, %v962
  %v972 = vmul.f32 %v951, %v963
  %v973 = vmul.f32 %v952, %v960
  %979 = vrot.lane.b32.xlu0 %v969, 126
  %v980 = vpop.permute.xlu0 %979
  %981 = vrot.lane.b32.xlu0 %v970, 126
  %v982 = vpop.permute.xlu0 %981
  %983 = vrot.lane.b32.xlu0 %v971, 126
  %v984 = vpop.permute.xlu0 %983
  %985 = vrot.lane.b32.xlu0 %v972, 126
  %v986 = vpop.permute.xlu0 %985
  %987 = vrot.lane.b32.xlu0 %v973, 126
  %v988 = vpop.permute.xlu0 %987
  %v989 = vsel %vm229, %v980, %v982
  %v990 = vsel %vm229, %v982, %v984
  %v991 = vsel %vm229, %v984, %v986
  %v992 = vsel %vm229, %v986, %v988
  %997 = vst [vmem:[#allocation4 + $0x40] sm:$0xff] %v989
  %998 = vst [vmem:[#allocation4 + $0x48] sm:$0xff] %v990
  %999 = vst [vmem:[#allocation4 + $0x50] sm:$0xff] %v991
  %1000 = vst [vmem:[#allocation4 + $0x58] sm:$0xff] %v992
  %v1001 = vld [vmem:[#allocation3] sm:$0xff]
  %v1002 = vld [vmem:[#allocation3 + $0x8] sm:$0xff]
  %v1003 = vld [vmem:[#allocation3 + $0x10] sm:$0xff]
  %v1004 = vld [vmem:[#allocation3 + $0x18] sm:$0xff]
  %v1005 = vld [vmem:[#allocation3 + $0x20] sm:$0xff]
  %1006 = vrot.lane.b32.xlu0 %v265, 16
  %v1007 = vpop.permute.xlu0 %1006
  %1008 = vrot.lane.b32.xlu0 %v266, 16
  %v1009 = vpop.permute.xlu0 %1008
  %1010 = vrot.lane.b32.xlu0 %v267, 16
  %v1011 = vpop.permute.xlu0 %1010
  %1012 = vrot.lane.b32.xlu0 %v268, 16
  %v1013 = vpop.permute.xlu0 %1012
  %v1014 = vsel %vm281, %v1007, %v1009
  %v1015 = vsel %vm281, %v1009, %v1011
  %v1016 = vsel %vm281, %v1011, %v1013
  %v1022 = vmul.f32 %v1001, %v1007
  %v1023 = vmul.f32 %v1002, %v1014
  %v1024 = vmul.f32 %v1003, %v1015
  %v1025 = vmul.f32 %v1004, %v1016
  %v1026 = vmul.f32 %v1005, %v1013
  %1032 = vrot.lane.b32.xlu0 %v1022, 112
  %v1033 = vpop.permute.xlu0 %1032
  %1034 = vrot.lane.b32.xlu0 %v1023, 112
  %v1035 = vpop.permute.xlu0 %1034
  %1036 = vrot.lane.b32.xlu0 %v1024, 112
  %v1037 = vpop.permute.xlu0 %1036
  %1038 = vrot.lane.b32.xlu0 %v1025, 112
  %v1039 = vpop.permute.xlu0 %1038
  %1040 = vrot.lane.b32.xlu0 %v1026, 112
  %v1041 = vpop.permute.xlu0 %1040
  %v1042 = vsel %vm307, %v1033, %v1035
  %v1043 = vsel %vm307, %v1035, %v1037
  %v1044 = vsel %vm307, %v1037, %v1039
  %v1045 = vsel %vm307, %v1039, %v1041
  %1050 = vst [vmem:[#allocation4 + $0x60] sm:$0xff] %v1042
  %1051 = vst [vmem:[#allocation4 + $0x68] sm:$0xff] %v1043
  %1052 = vst [vmem:[#allocation4 + $0x70] sm:$0xff] %v1044
  %1053 = vst [vmem:[#allocation4 + $0x78] sm:$0xff] %v1045
  %v1054 = vld [vmem:[#allocation3] sm:$0xff]
  %v1055 = vld [vmem:[#allocation3 + $0x8] sm:$0xff]
  %v1056 = vld [vmem:[#allocation3 + $0x10] sm:$0xff]
  %v1057 = vld [vmem:[#allocation3 + $0x18] sm:$0xff]
  %v1058 = vld [vmem:[#allocation3 + $0x20] sm:$0xff]
  %1059 = vrot.lane.b32.xlu0 %v331, 17
  %v1060 = vpop.permute.xlu0 %1059
  %1061 = vrot.lane.b32.xlu0 %v332, 17
  %v1062 = vpop.permute.xlu0 %1061
  %1063 = vrot.lane.b32.xlu0 %v333, 17
  %v1064 = vpop.permute.xlu0 %1063
  %1065 = vrot.lane.b32.xlu0 %v334, 17
  %v1066 = vpop.permute.xlu0 %1065
  %v1067 = vsel %vm347, %v1060, %v1062
  %v1068 = vsel %vm347, %v1062, %v1064
  %v1069 = vsel %vm347, %v1064, %v1066
  %v1075 = vmul.f32 %v1054, %v1060
  %v1076 = vmul.f32 %v1055, %v1067
  %v1077 = vmul.f32 %v1056, %v1068
  %v1078 = vmul.f32 %v1057, %v1069
  %v1079 = vmul.f32 %v1058, %v1066
  %1085 = vrot.lane.b32.xlu0 %v1075, 111
  %v1086 = vpop.permute.xlu0 %1085
  %1087 = vrot.lane.b32.xlu0 %v1076, 111
  %v1088 = vpop.permute.xlu0 %1087
  %1089 = vrot.lane.b32.xlu0 %v1077, 111
  %v1090 = vpop.permute.xlu0 %1089
  %1091 = vrot.lane.b32.xlu0 %v1078, 111
  %v1092 = vpop.permute.xlu0 %1091
  %1093 = vrot.lane.b32.xlu0 %v1079, 111
  %v1094 = vpop.permute.xlu0 %1093
  %v1095 = vsel %vm372, %v1086, %v1088
  %v1096 = vsel %vm372, %v1088, %v1090
  %v1097 = vsel %vm372, %v1090, %v1092
  %v1098 = vsel %vm372, %v1092, %v1094
  %1103 = vst [vmem:[#allocation4 + $0x80] sm:$0xff] %v1095
  %1104 = vst [vmem:[#allocation4 + $0x88] sm:$0xff] %v1096
  %1105 = vst [vmem:[#allocation4 + $0x90] sm:$0xff] %v1097
  %1106 = vst [vmem:[#allocation4 + $0x98] sm:$0xff] %v1098
  %v1107 = vld [vmem:[#allocation3] sm:$0xff]
  %v1108 = vld [vmem:[#allocation3 + $0x8] sm:$0xff]
  %v1109 = vld [vmem:[#allocation3 + $0x10] sm:$0xff]
  %v1110 = vld [vmem:[#allocation3 + $0x18] sm:$0xff]
  %v1111 = vld [vmem:[#allocation3 + $0x20] sm:$0xff]
  %1112 = vrot.lane.b32.xlu0 %v396, 18
  %v1113 = vpop.permute.xlu0 %1112
  %1114 = vrot.lane.b32.xlu0 %v397, 18
  %v1115 = vpop.permute.xlu0 %1114
  %1116 = vrot.lane.b32.xlu0 %v398, 18
  %v1117 = vpop.permute.xlu0 %1116
  %1118 = vrot.lane.b32.xlu0 %v399, 18
  %v1119 = vpop.permute.xlu0 %1118
  %v1120 = vsel %vm412, %v1113, %v1115
  %v1121 = vsel %vm412, %v1115, %v1117
  %v1122 = vsel %vm412, %v1117, %v1119
  %v1128 = vmul.f32 %v1107, %v1113
  %v1129 = vmul.f32 %v1108, %v1120
  %v1130 = vmul.f32 %v1109, %v1121
  %v1131 = vmul.f32 %v1110, %v1122
  %v1132 = vmul.f32 %v1111, %v1119
  %1138 = vrot.lane.b32.xlu0 %v1128, 110
  %v1139 = vpop.permute.xlu0 %1138
  %1140 = vrot.lane.b32.xlu0 %v1129, 110
  %v1141 = vpop.permute.xlu0 %1140
  %1142 = vrot.lane.b32.xlu0 %v1130, 110
  %v1143 = vpop.permute.xlu0 %1142
  %1144 = vrot.lane.b32.xlu0 %v1131, 110
  %v1145 = vpop.permute.xlu0 %1144
  %1146 = vrot.lane.b32.xlu0 %v1132, 110
  %v1147 = vpop.permute.xlu0 %1146
  %v1148 = vsel %vm438, %v1139, %v1141
  %v1149 = vsel %vm438, %v1141, %v1143
  %v1150 = vsel %vm438, %v1143, %v1145
  %v1151 = vsel %vm438, %v1145, %v1147
  %1156 = vst [vmem:[#allocation4 + $0xa0] sm:$0xff] %v1148
  %1157 = vst [vmem:[#allocation4 + $0xa8] sm:$0xff] %v1149
  %1158 = vst [vmem:[#allocation4 + $0xb0] sm:$0xff] %v1150
  %1159 = vst [vmem:[#allocation4 + $0xb8] sm:$0xff] %v1151
  %v1160 = vld [vmem:[#allocation3] sm:$0xff]
  %v1161 = vld [vmem:[#allocation3 + $0x8] sm:$0xff]
  %v1162 = vld [vmem:[#allocation3 + $0x10] sm:$0xff]
  %v1163 = vld [vmem:[#allocation3 + $0x18] sm:$0xff]
  %v1164 = vld [vmem:[#allocation3 + $0x20] sm:$0xff]
  %1165 = vrot.lane.b32.xlu0 %v478, 32
  %v1166 = vpop.permute.xlu0 %1165
  %1167 = vrot.lane.b32.xlu0 %v479, 32
  %v1168 = vpop.permute.xlu0 %1167
  %1169 = vrot.lane.b32.xlu0 %v480, 32
  %v1170 = vpop.permute.xlu0 %1169
  %1171 = vrot.lane.b32.xlu0 %v481, 32
  %v1172 = vpop.permute.xlu0 %1171
  %v1173 = vsel %vm494, %v1166, %v1168
  %v1174 = vsel %vm494, %v1168, %v1170
  %v1175 = vsel %vm494, %v1170, %v1172
  %v1181 = vmul.f32 %v1160, %v1166
  %v1182 = vmul.f32 %v1161, %v1173
  %v1183 = vmul.f32 %v1162, %v1174
  %v1184 = vmul.f32 %v1163, %v1175
  %v1185 = vmul.f32 %v1164, %v1172
  %1191 = vrot.lane.b32.xlu0 %v1181, 96
  %v1192 = vpop.permute.xlu0 %1191
  %1193 = vrot.lane.b32.xlu0 %v1182, 96
  %v1194 = vpop.permute.xlu0 %1193
  %1195 = vrot.lane.b32.xlu0 %v1183, 96
  %v1196 = vpop.permute.xlu0 %1195
  %1197 = vrot.lane.b32.xlu0 %v1184, 96
  %v1198 = vpop.permute.xlu0 %1197
  %1199 = vrot.lane.b32.xlu0 %v1185, 96
  %v1200 = vpop.permute.xlu0 %1199
  %v1201 = vsel %vm519, %v1192, %v1194
  %v1202 = vsel %vm519, %v1194, %v1196
  %v1203 = vsel %vm519, %v1196, %v1198
  %v1204 = vsel %vm519, %v1198, %v1200
  %1209 = vst [vmem:[#allocation4 + $0xc0] sm:$0xff] %v1201
  %1210 = vst [vmem:[#allocation4 + $0xc8] sm:$0xff] %v1202
  %1211 = vst [vmem:[#allocation4 + $0xd0] sm:$0xff] %v1203
  %1212 = vst [vmem:[#allocation4 + $0xd8] sm:$0xff] %v1204
  %v1213 = vld [vmem:[#allocation3] sm:$0xff]
  %v1214 = vld [vmem:[#allocation3 + $0x8] sm:$0xff]
  %v1215 = vld [vmem:[#allocation3 + $0x10] sm:$0xff]
  %v1216 = vld [vmem:[#allocation3 + $0x18] sm:$0xff]
  %v1217 = vld [vmem:[#allocation3 + $0x20] sm:$0xff]
  %1218 = vrot.lane.b32.xlu0 %v543, 33
  %v1219 = vpop.permute.xlu0 %1218
  %1220 = vrot.lane.b32.xlu0 %v544, 33
  %v1221 = vpop.permute.xlu0 %1220
  %1222 = vrot.lane.b32.xlu0 %v545, 33
  %v1223 = vpop.permute.xlu0 %1222
  %1224 = vrot.lane.b32.xlu0 %v546, 33
  %v1225 = vpop.permute.xlu0 %1224
  %v1226 = vsel %vm559, %v1219, %v1221
  %v1227 = vsel %vm559, %v1221, %v1223
  %v1228 = vsel %vm559, %v1223, %v1225
  %v1234 = vmul.f32 %v1213, %v1219
  %v1235 = vmul.f32 %v1214, %v1226
  %v1236 = vmul.f32 %v1215, %v1227
  %v1237 = vmul.f32 %v1216, %v1228
  %v1238 = vmul.f32 %v1217, %v1225
  %1244 = vrot.lane.b32.xlu0 %v1234, 95
  %v1245 = vpop.permute.xlu0 %1244
  %1246 = vrot.lane.b32.xlu0 %v1235, 95
  %v1247 = vpop.permute.xlu0 %1246
  %1248 = vrot.lane.b32.xlu0 %v1236, 95
  %v1249 = vpop.permute.xlu0 %1248
  %1250 = vrot.lane.b32.xlu0 %v1237, 95
  %v1251 = vpop.permute.xlu0 %1250
  %1252 = vrot.lane.b32.xlu0 %v1238, 95
  %v1253 = vpop.permute.xlu0 %1252
  %v1254 = vsel %vm585, %v1245, %v1247
  %v1255 = vsel %vm585, %v1247, %v1249
  %v1256 = vsel %vm585, %v1249, %v1251
  %v1257 = vsel %vm585, %v1251, %v1253
  %1262 = vst [vmem:[#allocation4 + $0xe0] sm:$0xff] %v1254
  %1263 = vst [vmem:[#allocation4 + $0xe8] sm:$0xff] %v1255
  %1264 = vst [vmem:[#allocation4 + $0xf0] sm:$0xff] %v1256
  %1265 = vst [vmem:[#allocation4 + $0xf8] sm:$0xff] %v1257
  %v1266 = vld [vmem:[#allocation3] sm:$0xff]
  %v1267 = vld [vmem:[#allocation3 + $0x8] sm:$0xff]
  %v1268 = vld [vmem:[#allocation3 + $0x10] sm:$0xff]
  %v1269 = vld [vmem:[#allocation3 + $0x18] sm:$0xff]
  %v1270 = vld [vmem:[#allocation3 + $0x20] sm:$0xff]
  %1271 = vrot.lane.b32.xlu0 %v609, 34
  %v1272 = vpop.permute.xlu0 %1271
  %1273 = vrot.lane.b32.xlu0 %v610, 34
  %v1274 = vpop.permute.xlu0 %1273
  %1275 = vrot.lane.b32.xlu0 %v611, 34
  %v1276 = vpop.permute.xlu0 %1275
  %1277 = vrot.lane.b32.xlu0 %v612, 34
  %v1278 = vpop.permute.xlu0 %1277
  %v1279 = vsel %vm625, %v1272, %v1274
  %v1280 = vsel %vm625, %v1274, %v1276
  %v1281 = vsel %vm625, %v1276, %v1278
  %v1287 = vmul.f32 %v1266, %v1272
  %v1288 = vmul.f32 %v1267, %v1279
  %v1289 = vmul.f32 %v1268, %v1280
  %v1290 = vmul.f32 %v1269, %v1281
  %v1291 = vmul.f32 %v1270, %v1278
  %1297 = vrot.lane.b32.xlu0 %v1287, 94
  %v1298 = vpop.permute.xlu0 %1297
  %1299 = vrot.lane.b32.xlu0 %v1288, 94
  %v1300 = vpop.permute.xlu0 %1299
  %1301 = vrot.lane.b32.xlu0 %v1289, 94
  %v1302 = vpop.permute.xlu0 %1301
  %1303 = vrot.lane.b32.xlu0 %v1290, 94
  %v1304 = vpop.permute.xlu0 %1303
  %1305 = vrot.lane.b32.xlu0 %v1291, 94
  %v1306 = vpop.permute.xlu0 %1305
  %v1307 = vsel %vm650, %v1298, %v1300
  %v1308 = vsel %vm650, %v1300, %v1302
  %v1309 = vsel %vm650, %v1302, %v1304
  %v1310 = vsel %vm650, %v1304, %v1306
  %1315 = vst [vmem:[#allocation4 + $0x100] sm:$0xff] %v1307
  %1316 = vst [vmem:[#allocation4 + $0x108] sm:$0xff] %v1308
  %1317 = vst [vmem:[#allocation4 + $0x110] sm:$0xff] %v1309
  %1318 = vst [vmem:[#allocation4 + $0x118] sm:$0xff] %v1310
  %s1319 = scalar_lea.vmem [#allocation4], 288
  %1320 = vst.msk [vmem:[%s1319] ss:$8 sm:$0xf] %vm666, 1.0
  %1321 = vst.msk [vmem:[%s1319] ss:$8 sm:$0x0] %vm666, 1.0
  %v1322 = vld [vmem:[%s1 + $0x8] sm:$0xff]
  %v1323 = vld [vmem:[%s1 + $0x10] sm:$0xff]
  %v1324 = vld [vmem:[#allocation4] sm:$0xff]
  %v1325 = vld [vmem:[#allocation4 + $0x8] sm:$0xff]
  %v1326 = vld [vmem:[#allocation4 + $0x10] sm:$0xff]
  %v1327 = vld [vmem:[#allocation4 + $0x18] sm:$0xff]
  %v1328 = vld [vmem:[#allocation4 + $0x20] sm:$0xff]
  %v1329 = vld [vmem:[#allocation4 + $0x28] sm:$0xff]
  %v1330 = vld [vmem:[#allocation4 + $0x30] sm:$0xff]
  %v1331 = vld [vmem:[#allocation4 + $0x38] sm:$0xff]
  %v1332 = vld [vmem:[#allocation4 + $0x40] sm:$0xff]
  %v1333 = vld [vmem:[#allocation4 + $0x48] sm:$0xff]
  %v1334 = vld [vmem:[#allocation4 + $0x50] sm:$0xff]
  %v1335 = vld [vmem:[#allocation4 + $0x58] sm:$0xff]
  %v1336 = vld [vmem:[#allocation4 + $0x60] sm:$0xff]
  %v1337 = vld [vmem:[#allocation4 + $0x68] sm:$0xff]
  %v1338 = vld [vmem:[#allocation4 + $0x70] sm:$0xff]
  %v1339 = vld [vmem:[#allocation4 + $0x78] sm:$0xff]
  %v1340 = vld [vmem:[#allocation4 + $0x80] sm:$0xff]
  %v1341 = vld [vmem:[#allocation4 + $0x88] sm:$0xff]
  %v1342 = vld [vmem:[#allocation4 + $0x90] sm:$0xff]
  %v1343 = vld [vmem:[#allocation4 + $0x98] sm:$0xff]
  %v1344 = vld [vmem:[#allocation4 + $0xa0] sm:$0xff]
  %v1345 = vld [vmem:[#allocation4 + $0xa8] sm:$0xff]
  %v1346 = vld [vmem:[#allocation4 + $0xb0] sm:$0xff]
  %v1347 = vld [vmem:[#allocation4 + $0xb8] sm:$0xff]
  %v1348 = vld [vmem:[#allocation4 + $0xc0] sm:$0xff]
  %v1349 = vld [vmem:[#allocation4 + $0xc8] sm:$0xff]
  %v1350 = vld [vmem:[#allocation4 + $0xd0] sm:$0xff]
  %v1351 = vld [vmem:[#allocation4 + $0xd8] sm:$0xff]
  %v1352 = vld [vmem:[#allocation4 + $0xe0] sm:$0xff]
  %v1353 = vld [vmem:[#allocation4 + $0xe8] sm:$0xff]
  %v1354 = vld [vmem:[#allocation4 + $0xf0] sm:$0xff]
  %v1355 = vld [vmem:[#allocation4 + $0xf8] sm:$0xff]
  %v1356 = vld [vmem:[#allocation4 + $0x100] sm:$0xff]
  %v1357 = vld [vmem:[#allocation4 + $0x108] sm:$0xff]
  %v1358 = vld [vmem:[#allocation4 + $0x110] sm:$0xff]
  %v1359 = vld [vmem:[#allocation4 + $0x118] sm:$0xff]
  %v1360 = vld [vmem:[#allocation4 + $0x120] sm:$0x1]
  %v1361 = vld [vmem:[#allocation4 + $0x128] sm:$0x1]
  %v1362 = vld [vmem:[#allocation4 + $0x130] sm:$0x1]
  %v1363 = vld [vmem:[#allocation4 + $0x138] sm:$0x1]
  %vm1364 = vcmask 596992
  %v1366 = vsel %vm1364, %v1322, 0
  %v1369 = vsel %vm1364, %v1323, 0
  %vm1371 = vcmask 1040384
  %v1373 = vsel %vm1371, %v1360, 0
  %v1376 = vsel %vm1371, %v1361, 0
  %v1379 = vsel %vm1371, %v1362, 0
  %v1382 = vsel %vm1371, %v1363, 0
  %1384 = vmatprep.subr.mxu0 %v1325
  %1385 = vmatpush1.msra.mxu0 %v1324
  %1386 = vmatprep.subr.mxu0 %v1329
  %1387 = vmatpush1.msra.mxu0 %v1328
  %1388 = vmatprep.subr.mxu0 %v1333
  %1389 = vmatpush1.msra.mxu0 %v1332
  %1390 = vmatprep.subr.mxu0 %v1337
  %1391 = vmatpush1.msra.mxu0 %v1336
  %1392 = vmatprep.subr.mxu0 %v1341
  %1393 = vmatpush1.msra.mxu0 %v1340
  %1394 = vmatprep.subr.mxu0 %v1345
  %1395 = vmatpush1.msra.mxu0 %v1344
  %1396 = vmatprep.subr.mxu0 %v1349
  %1397 = vmatpush1.msra.mxu0 %v1348
  %1398 = vmatprep.subr.mxu0 %v1353
  %1399 = vmatpush1.msra.mxu0 %v1352
  %1400 = vmatprep.subr.mxu0 %v1357
  %1401 = vmatpush1.msra.mxu0 %v1356
  %1402 = vmatprep.subr.mxu0 %v1376
  %1403 = vmatpush1.msra.mxu0 %v1373
  %1404 = vmatprep.subr.mxu0 0.0
  %1405 = vmatpush1.msra.mxu0 0.0
  %1406 = vmatprep.subr.mxu0 0.0
  %1407 = vmatpush1.msra.mxu0 0.0
  %1408 = vmatprep.subr.mxu0 0.0
  %1409 = vmatpush1.msra.mxu0 0.0
  %1410 = vmatprep.subr.mxu0 0.0
  %1411 = vmatpush1.msra.mxu0 0.0
  %1412 = vmatprep.subr.mxu0 0.0
  %1413 = vmatpush1.msra.mxu0 0.0
  %1414 = vmatprep.subr.mxu0 0.0
  %1415 = vmatpush1.msra.mxu0 0.0
  %1416 = vmatprep.subr.mxu0 0.0
  %1417 = vmatpush1.msra.mxu0 0.0
  %1418 = vmatprep.subr.mxu0 0.0
  %1419 = vmatpush1.msra.mxu0 0.0
  %1420 = vmatprep.subr.mxu0 0.0
  %1421 = vmatpush1.msra.mxu0 0.0
  %1422 = vmatprep.subr.mxu0 0.0
  %1423 = vmatpush1.msra.mxu0 0.0
  %1424 = vmatprep.subr.mxu0 0.0
  %1425 = vmatpush1.msra.mxu0 0.0
  %1426 = vmatprep.subr.mxu0 0.0
  %1427 = vmatpush1.msra.mxu0 0.0
  %1428 = vmatprep.subr.mxu0 0.0
  %1429 = vmatpush1.msra.mxu0 0.0
  %1430 = vmatprep.subr.mxu0 0.0
  %1431 = vmatpush1.msra.mxu0 0.0
  %1432 = vmatprep.subr.mxu0 0.0
  %1433 = vmatpush1.msra.mxu0 0.0
  %1434 = vmatprep.subr.mxu0 0.0
  %1435 = vmatpush1.msra.mxu0 0.0
  %1436 = vmatprep.subr.mxu0 0.0
  %1437 = vmatpush1.msra.mxu0 0.0
  %1438 = vmatprep.subr.mxu0 0.0
  %1439 = vmatpush1.msra.mxu0 0.0
  %1440 = vmatprep.subr.mxu0 0.0
  %1441 = vmatpush1.msra.mxu0 0.0
  %1442 = vmatprep.subr.mxu0 0.0
  %1443 = vmatpush1.msra.mxu0 0.0
  %1444 = vmatprep.subr.mxu0 0.0
  %1445 = vmatpush1.msra.mxu0 0.0
  %1446 = vmatprep.subr.mxu0 0.0
  %1447 = vmatpush1.msra.mxu0 0.0
  %1448 = vmatprep.mubr.f32.mxu0 0.0
  %1449 = vmatmul.mubr.f32.gmra.mrb[0].mxu0 %v1366
  %v1450 = vpop.f32.mrb[0].mxu0
  %v1451 = vadd.f32 0.0, %v1450
  %v1452 = vpop.f32.mrb[0].mxu0
  %v1453 = vadd.f32 0.0, %v1452
  %1454 = vmatprep.mubr.f32.mxu0 0.0
  %1455 = vmatmul.mubr.f32.gmra.mrb[0].mxu0 %v1369
  %v1456 = vpop.f32.mrb[0].mxu0
  %v1457 = vadd.f32 0.0, %v1456
  %v1458 = vpop.f32.mrb[0].mxu0
  %v1459 = vadd.f32 0.0, %v1458
  %1460 = vdwg.mxu0
  %1461 = vmatprep.subr.mxu0 %v1327
  %1462 = vmatpush1.msra.mxu0 %v1326
  %1463 = vmatprep.subr.mxu0 %v1331
  %1464 = vmatpush1.msra.mxu0 %v1330
  %1465 = vmatprep.subr.mxu0 %v1335
  %1466 = vmatpush1.msra.mxu0 %v1334
  %1467 = vmatprep.subr.mxu0 %v1339
  %1468 = vmatpush1.msra.mxu0 %v1338
  %1469 = vmatprep.subr.mxu0 %v1343
  %1470 = vmatpush1.msra.mxu0 %v1342
  %1471 = vmatprep.subr.mxu0 %v1347
  %1472 = vmatpush1.msra.mxu0 %v1346
  %1473 = vmatprep.subr.mxu0 %v1351
  %1474 = vmatpush1.msra.mxu0 %v1350
  %1475 = vmatprep.subr.mxu0 %v1355
  %1476 = vmatpush1.msra.mxu0 %v1354
  %1477 = vmatprep.subr.mxu0 %v1359
  %1478 = vmatpush1.msra.mxu0 %v1358
  %1479 = vmatprep.subr.mxu0 %v1382
  %1480 = vmatpush1.msra.mxu0 %v1379
  %1481 = vmatprep.subr.mxu0 0.0
  %1482 = vmatpush1.msra.mxu0 0.0
  %1483 = vmatprep.subr.mxu0 0.0
  %1484 = vmatpush1.msra.mxu0 0.0
  %1485 = vmatprep.subr.mxu0 0.0
  %1486 = vmatpush1.msra.mxu0 0.0
  %1487 = vmatprep.subr.mxu0 0.0
  %1488 = vmatpush1.msra.mxu0 0.0
  %1489 = vmatprep.subr.mxu0 0.0
  %1490 = vmatpush1.msra.mxu0 0.0
  %1491 = vmatprep.subr.mxu0 0.0
  %1492 = vmatpush1.msra.mxu0 0.0
  %1493 = vmatprep.subr.mxu0 0.0
  %1494 = vmatpush1.msra.mxu0 0.0
  %1495 = vmatprep.subr.mxu0 0.0
  %1496 = vmatpush1.msra.mxu0 0.0
  %1497 = vmatprep.subr.mxu0 0.0
  %1498 = vmatpush1.msra.mxu0 0.0
  %1499 = vmatprep.subr.mxu0 0.0
  %1500 = vmatpush1.msra.mxu0 0.0
  %1501 = vmatprep.subr.mxu0 0.0
  %1502 = vmatpush1.msra.mxu0 0.0
  %1503 = vmatprep.subr.mxu0 0.0
  %1504 = vmatpush1.msra.mxu0 0.0
  %1505 = vmatprep.subr.mxu0 0.0
  %1506 = vmatpush1.msra.mxu0 0.0
  %1507 = vmatprep.subr.mxu0 0.0
  %1508 = vmatpush1.msra.mxu0 0.0
  %1509 = vmatprep.subr.mxu0 0.0
  %1510 = vmatpush1.msra.mxu0 0.0
  %1511 = vmatprep.subr.mxu0 0.0
  %1512 = vmatpush1.msra.mxu0 0.0
  %1513 = vmatprep.subr.mxu0 0.0
  %1514 = vmatpush1.msra.mxu0 0.0
  %1515 = vmatprep.subr.mxu0 0.0
  %1516 = vmatpush1.msra.mxu0 0.0
  %1517 = vmatprep.subr.mxu0 0.0
  %1518 = vmatpush1.msra.mxu0 0.0
  %1519 = vmatprep.subr.mxu0 0.0
  %1520 = vmatpush1.msra.mxu0 0.0
  %1521 = vmatprep.subr.mxu0 0.0
  %1522 = vmatpush1.msra.mxu0 0.0
  %1523 = vmatprep.subr.mxu0 0.0
  %1524 = vmatpush1.msra.mxu0 0.0
  %1525 = vmatprep.mubr.f32.mxu0 0.0
  %1526 = vmatmul.mubr.f32.gmra.mrb[0].mxu0 %v1366
  %v1527 = vpop.f32.mrb[0].mxu0
  %v1528 = vadd.f32 0.0, %v1527
  %v1529 = vpop.f32.mrb[0].mxu0
  %v1530 = vadd.f32 0.0, %v1529
  %1531 = vmatprep.mubr.f32.mxu0 0.0
  %1532 = vmatmul.mubr.f32.gmra.mrb[0].mxu0 %v1369
  %v1533 = vpop.f32.mrb[0].mxu0
  %v1534 = vadd.f32 0.0, %v1533
  %v1535 = vpop.f32.mrb[0].mxu0
  %v1536 = vadd.f32 0.0, %v1535
  %1537 = vdwg.mxu0
  %v1538 = vmax.f32 %v1451, 0.0
  %v1539 = vmax.f32 %v1453, 0.0
  %v1540 = vmax.f32 %v1528, 0.0
  %v1541 = vmax.f32 %v1530, 0.0
  %v1542 = vmax.f32 %v1457, 0.0
  %v1543 = vmax.f32 %v1459, 0.0
  %v1544 = vmax.f32 %v1534, 0.0
  %v1545 = vmax.f32 %v1536, 0.0
  %v1546 = vlaneseq
  %v1547 = vshrl.u32 %v1546, 7
  %v1548 = vshra.s32 %v12, 8
  %v1549 = vshra.s32 %v13, 8
  %v1550 = vshra.s32 %v14, 8
  %v1551 = vshra.s32 %v15, 8
  %vm1552 = vcmp.eq.s32.totalorder %v1548, %v1547
  %vm1553 = vcmp.eq.s32.totalorder %v1549, %v1547
  %vm1554 = vcmp.eq.s32.totalorder %v1550, %v1547
  %vm1555 = vcmp.eq.s32.totalorder %v1551, %v1547
  %v1556 = vand.u32 %v24, 1
  %v1557 = vand.u32 %v25, 1
  %v1558 = vand.u32 %v26, 1
  %v1559 = vand.u32 %v27, 1
  %vm1560 = vcmp.eq.s32.totalorder %v1556, 0
  %vm1561 = vcmp.eq.s32.totalorder %v1557, 0
  %vm1562 = vcmp.eq.s32.totalorder %v1558, 0
  %vm1563 = vcmp.eq.s32.totalorder %v1559, 0
  %vm1564 = vmand %vm1552, %vm1560
  %vm1565 = vmand %vm1553, %vm1561
  %vm1566 = vmand %vm1554, %vm1562
  %vm1567 = vmand %vm1555, %vm1563
  %v1568 = vand.u32 %v16, 1
  %v1569 = vand.u32 %v17, 1
  %v1570 = vand.u32 %v18, 1
  %v1571 = vand.u32 %v19, 1
  %vm1572 = vcmp.eq.s32.totalorder %v1568, 0
  %vm1573 = vcmp.eq.s32.totalorder %v1569, 0
  %vm1574 = vcmp.eq.s32.totalorder %v1570, 0
  %vm1575 = vcmp.eq.s32.totalorder %v1571, 0
  %vm1576 = vmand %vm1564, %vm1572
  %vm1577 = vmand %vm1565, %vm1573
  %vm1578 = vmand %vm1566, %vm1574
  %vm1579 = vmand %vm1567, %vm1575
  %v1580 = vsel %vm1576, 0.015625, 0.0
  %v1581 = vsel %vm1577, 0.015625, 0.0
  %v1582 = vsel %vm1578, 0.015625, 0.0
  %v1583 = vsel %vm1579, 0.015625, 0.0
  %1584 = vmatprep.subr.mxu0 %v1539
  %1585 = vmatpush1.xpose.msra.mxu0 %v1538
  %1586 = vmatprep.subr.mxu0 %v1543
  %1587 = vmatpush1.xpose.msra.mxu0 %v1542
  %1588 = vmatprep.subr.mxu0 0.0
  %1589 = vmatpush1.xpose.msra.mxu0 0.0
  %1590 = vmatprep.subr.mxu0 0.0
  %1591 = vmatpush1.xpose.msra.mxu0 0.0
  %1592 = vmatprep.subr.mxu0 0.0
  %1593 = vmatpush1.xpose.msra.mxu0 0.0
  %1594 = vmatprep.subr.mxu0 0.0
  %1595 = vmatpush1.xpose.msra.mxu0 0.0
  %1596 = vmatprep.subr.mxu0 0.0
  %1597 = vmatpush1.xpose.msra.mxu0 0.0
  %1598 = vmatprep.subr.mxu0 0.0
  %1599 = vmatpush1.xpose.msra.mxu0 0.0
  %1600 = vmatprep.subr.mxu0 0.0
  %1601 = vmatpush1.xpose.msra.mxu0 0.0
  %1602 = vmatprep.subr.mxu0 0.0
  %1603 = vmatpush1.xpose.msra.mxu0 0.0
  %1604 = vmatprep.subr.mxu0 0.0
  %1605 = vmatpush1.xpose.msra.mxu0 0.0
  %1606 = vmatprep.subr.mxu0 0.0
  %1607 = vmatpush1.xpose.msra.mxu0 0.0
  %1608 = vmatprep.subr.mxu0 0.0
  %1609 = vmatpush1.xpose.msra.mxu0 0.0
  %1610 = vmatprep.subr.mxu0 0.0
  %1611 = vmatpush1.xpose.msra.mxu0 0.0
  %1612 = vmatprep.subr.mxu0 0.0
  %1613 = vmatpush1.xpose.msra.mxu0 0.0
  %1614 = vmatprep.subr.mxu0 0.0
  %1615 = vmatpush1.xpose.msra.mxu0 0.0
  %1616 = vmatprep.subr.mxu0 0.0
  %1617 = vmatpush1.xpose.msra.mxu0 0.0
  %1618 = vmatprep.subr.mxu0 0.0
  %1619 = vmatpush1.xpose.msra.mxu0 0.0
  %1620 = vmatprep.subr.mxu0 0.0
  %1621 = vmatpush1.xpose.msra.mxu0 0.0
  %1622 = vmatprep.subr.mxu0 0.0
  %1623 = vmatpush1.xpose.msra.mxu0 0.0
  %1624 = vmatprep.subr.mxu0 0.0
  %1625 = vmatpush1.xpose.msra.mxu0 0.0
  %1626 = vmatprep.subr.mxu0 0.0
  %1627 = vmatpush1.xpose.msra.mxu0 0.0
  %1628 = vmatprep.subr.mxu0 0.0
  %1629 = vmatpush1.xpose.msra.mxu0 0.0
  %1630 = vmatprep.subr.mxu0 0.0
  %1631 = vmatpush1.xpose.msra.mxu0 0.0
  %1632 = vmatprep.subr.mxu0 0.0
  %1633 = vmatpush1.xpose.msra.mxu0 0.0
  %1634 = vmatprep.subr.mxu0 0.0
  %1635 = vmatpush1.xpose.msra.mxu0 0.0
  %1636 = vmatprep.subr.mxu0 0.0
  %1637 = vmatpush1.xpose.msra.mxu0 0.0
  %1638 = vmatprep.subr.mxu0 0.0
  %1639 = vmatpush1.xpose.msra.mxu0 0.0
  %1640 = vmatprep.subr.mxu0 0.0
  %1641 = vmatpush1.xpose.msra.mxu0 0.0
  %1642 = vmatprep.subr.mxu0 0.0
  %1643 = vmatpush1.xpose.msra.mxu0 0.0
  %1644 = vmatprep.subr.mxu0 0.0
  %1645 = vmatpush1.xpose.msra.mxu0 0.0
  %1646 = vmatprep.subr.mxu0 0.0
  %1647 = vmatpush1.xpose.msra.mxu0 0.0
  %1648 = vmatprep.mubr.f32.mxu0 %v1581
  %1649 = vmatmul.mubr.f32.gmra.mrb[0].mxu0 %v1580
  %v1650 = vpop.f32.mrb[0].mxu0
  %v1651 = vadd.f32 0.0, %v1650
  %v1652 = vpop.f32.mrb[0].mxu0
  %1653 = vdwg.mxu0
  %1654 = vmatprep.subr.mxu0 %v1541
  %1655 = vmatpush1.xpose.msra.mxu0 %v1540
  %1656 = vmatprep.subr.mxu0 %v1545
  %1657 = vmatpush1.xpose.msra.mxu0 %v1544
  %1658 = vmatprep.subr.mxu0 0.0
  %1659 = vmatpush1.xpose.msra.mxu0 0.0
  %1660 = vmatprep.subr.mxu0 0.0
  %1661 = vmatpush1.xpose.msra.mxu0 0.0
  %1662 = vmatprep.subr.mxu0 0.0
  %1663 = vmatpush1.xpose.msra.mxu0 0.0
  %1664 = vmatprep.subr.mxu0 0.0
  %1665 = vmatpush1.xpose.msra.mxu0 0.0
  %1666 = vmatprep.subr.mxu0 0.0
  %1667 = vmatpush1.xpose.msra.mxu0 0.0
  %1668 = vmatprep.subr.mxu0 0.0
  %1669 = vmatpush1.xpose.msra.mxu0 0.0
  %1670 = vmatprep.subr.mxu0 0.0
  %1671 = vmatpush1.xpose.msra.mxu0 0.0
  %1672 = vmatprep.subr.mxu0 0.0
  %1673 = vmatpush1.xpose.msra.mxu0 0.0
  %1674 = vmatprep.subr.mxu0 0.0
  %1675 = vmatpush1.xpose.msra.mxu0 0.0
  %1676 = vmatprep.subr.mxu0 0.0
  %1677 = vmatpush1.xpose.msra.mxu0 0.0
  %1678 = vmatprep.subr.mxu0 0.0
  %1679 = vmatpush1.xpose.msra.mxu0 0.0
  %1680 = vmatprep.subr.mxu0 0.0
  %1681 = vmatpush1.xpose.msra.mxu0 0.0
  %1682 = vmatprep.subr.mxu0 0.0
  %1683 = vmatpush1.xpose.msra.mxu0 0.0
  %1684 = vmatprep.subr.mxu0 0.0
  %1685 = vmatpush1.xpose.msra.mxu0 0.0
  %1686 = vmatprep.subr.mxu0 0.0
  %1687 = vmatpush1.xpose.msra.mxu0 0.0
  %1688 = vmatprep.subr.mxu0 0.0
  %1689 = vmatpush1.xpose.msra.mxu0 0.0
  %1690 = vmatprep.subr.mxu0 0.0
  %1691 = vmatpush1.xpose.msra.mxu0 0.0
  %1692 = vmatprep.subr.mxu0 0.0
  %1693 = vmatpush1.xpose.msra.mxu0 0.0
  %1694 = vmatprep.subr.mxu0 0.0
  %1695 = vmatpush1.xpose.msra.mxu0 0.0
  %1696 = vmatprep.subr.mxu0 0.0
  %1697 = vmatpush1.xpose.msra.mxu0 0.0
  %1698 = vmatprep.subr.mxu0 0.0
  %1699 = vmatpush1.xpose.msra.mxu0 0.0
  %1700 = vmatprep.subr.mxu0 0.0
  %1701 = vmatpush1.xpose.msra.mxu0 0.0
  %1702 = vmatprep.subr.mxu0 0.0
  %1703 = vmatpush1.xpose.msra.mxu0 0.0
  %1704 = vmatprep.subr.mxu0 0.0
  %1705 = vmatpush1.xpose.msra.mxu0 0.0
  %1706 = vmatprep.subr.mxu0 0.0
  %1707 = vmatpush1.xpose.msra.mxu0 0.0
  %1708 = vmatprep.subr.mxu0 0.0
  %1709 = vmatpush1.xpose.msra.mxu0 0.0
  %1710 = vmatprep.subr.mxu0 0.0
  %1711 = vmatpush1.xpose.msra.mxu0 0.0
  %1712 = vmatprep.subr.mxu0 0.0
  %1713 = vmatpush1.xpose.msra.mxu0 0.0
  %1714 = vmatprep.subr.mxu0 0.0
  %1715 = vmatpush1.xpose.msra.mxu0 0.0
  %1716 = vmatprep.subr.mxu0 0.0
  %1717 = vmatpush1.xpose.msra.mxu0 0.0
  %1718 = vmatprep.mubr.f32.mxu0 %v1583
  %1719 = vmatmul.mubr.f32.gmra.mrb[0].mxu0 %v1582
  %v1720 = vpop.f32.mrb[0].mxu0
  %v1721 = vadd.f32 %v1651, %v1720
  %v1722 = vpop.f32.mrb[0].mxu0
  %1723 = vdwg.mxu0
  %v1724 = vld [vmem:[%s1 + $0x18] sm:$0xff]
  %v1725 = vld [vmem:[%s1 + $0x20] sm:$0xff]
  %v1726 = vld [vmem:[%s1 + $0x68] sm:$0x1]
  %v1727 = vlaneseq
  %v1728 = vshrl.u32 %v1727, 7
  %v1729 = vsub.s32 0, %v1728
  %v1730 = vrot.slane %v1726, %v1729
  %v1732 = vsel %vm281, %v1721, 0
  %1734 = vmatprep.subr.mxu0 0.0
  %1735 = vmatpush1.msra.mxu0 %v1724
  %1736 = vmatprep.subr.mxu0 0.0
  %1737 = vmatpush1.msra.mxu0 %v1725
  %1738 = vmatprep.subr.mxu0 0.0
  %1739 = vmatpush1.msra.mxu0 0.0
  %1740 = vmatprep.subr.mxu0 0.0
  %1741 = vmatpush1.msra.mxu0 0.0
  %1742 = vmatprep.subr.mxu0 0.0
  %1743 = vmatpush1.msra.mxu0 0.0
  %1744 = vmatprep.subr.mxu0 0.0
  %1745 = vmatpush1.msra.mxu0 0.0
  %1746 = vmatprep.subr.mxu0 0.0
  %1747 = vmatpush1.msra.mxu0 0.0
  %1748 = vmatprep.subr.mxu0 0.0
  %1749 = vmatpush1.msra.mxu0 0.0
  %1750 = vmatprep.subr.mxu0 0.0
  %1751 = vmatpush1.msra.mxu0 0.0
  %1752 = vmatprep.subr.mxu0 0.0
  %1753 = vmatpush1.msra.mxu0 0.0
  %1754 = vmatprep.subr.mxu0 0.0
  %1755 = vmatpush1.msra.mxu0 0.0
  %1756 = vmatprep.subr.mxu0 0.0
  %1757 = vmatpush1.msra.mxu0 0.0
  %1758 = vmatprep.subr.mxu0 0.0
  %1759 = vmatpush1.msra.mxu0 0.0
  %1760 = vmatprep.subr.mxu0 0.0
  %1761 = vmatpush1.msra.mxu0 0.0
  %1762 = vmatprep.subr.mxu0 0.0
  %1763 = vmatpush1.msra.mxu0 0.0
  %1764 = vmatprep.subr.mxu0 0.0
  %1765 = vmatpush1.msra.mxu0 0.0
  %1766 = vmatprep.subr.mxu0 0.0
  %1767 = vmatpush1.msra.mxu0 0.0
  %1768 = vmatprep.subr.mxu0 0.0
  %1769 = vmatpush1.msra.mxu0 0.0
  %1770 = vmatprep.subr.mxu0 0.0
  %1771 = vmatpush1.msra.mxu0 0.0
  %1772 = vmatprep.subr.mxu0 0.0
  %1773 = vmatpush1.msra.mxu0 0.0
  %1774 = vmatprep.subr.mxu0 0.0
  %1775 = vmatpush1.msra.mxu0 0.0
  %1776 = vmatprep.subr.mxu0 0.0
  %1777 = vmatpush1.msra.mxu0 0.0
  %1778 = vmatprep.subr.mxu0 0.0
  %1779 = vmatpush1.msra.mxu0 0.0
  %1780 = vmatprep.subr.mxu0 0.0
  %1781 = vmatpush1.msra.mxu0 0.0
  %1782 = vmatprep.subr.mxu0 0.0
  %1783 = vmatpush1.msra.mxu0 0.0
  %1784 = vmatprep.subr.mxu0 0.0
  %1785 = vmatpush1.msra.mxu0 0.0
  %1786 = vmatprep.subr.mxu0 0.0
  %1787 = vmatpush1.msra.mxu0 0.0
  %1788 = vmatprep.subr.mxu0 0.0
  %1789 = vmatpush1.msra.mxu0 0.0
  %1790 = vmatprep.subr.mxu0 0.0
  %1791 = vmatpush1.msra.mxu0 0.0
  %1792 = vmatprep.subr.mxu0 0.0
  %1793 = vmatpush1.msra.mxu0 0.0
  %1794 = vmatprep.subr.mxu0 0.0
  %1795 = vmatpush1.msra.mxu0 0.0
  %1796 = vmatprep.subr.mxu0 0.0
  %1797 = vmatpush1.msra.mxu0 0.0
  %1798 = vmatprep.mubr.f32.mxu0 0.0
  %1799 = vmatmul.mubr.f32.gmra.mrb[0].mxu0 %v1732
  %v1800 = vpop.f32.mrb[0].mxu0
  %v1801 = vadd.f32 %v1730, %v1800
  %v1802 = vpop.f32.mrb[0].mxu0
  %1803 = vdwg.mxu0
  %v1804 = vmax.f32 %v1801, 0.0
  %v1805 = vld [vmem:[%s1 + $0x28] sm:$0xff]
  %v1806 = vld [vmem:[%s1 + $0x30] sm:$0xff]
  %v1807 = vld [vmem:[%s1 + $0x38] sm:$0xff]
  %v1808 = vld [vmem:[%s1 + $0x40] sm:$0xff]
  %v1809 = vld [vmem:[%s1 + $0x69] sm:$0x1]
  %v1810 = vlaneseq
  %v1811 = vshrl.u32 %v1810, 7
  %v1812 = vsub.s32 0, %v1811
  %v1813 = vrot.slane %v1809, %v1812
  %v1815 = vsel %vm494, %v1804, 0
  %1817 = vmatprep.subr.mxu0 0.0
  %1818 = vmatpush1.msra.mxu0 %v1805
  %1819 = vmatprep.subr.mxu0 0.0
  %1820 = vmatpush1.msra.mxu0 %v1806
  %1821 = vmatprep.subr.mxu0 0.0
  %1822 = vmatpush1.msra.mxu0 %v1807
  %1823 = vmatprep.subr.mxu0 0.0
  %1824 = vmatpush1.msra.mxu0 %v1808
  %1825 = vmatprep.subr.mxu0 0.0
  %1826 = vmatpush1.msra.mxu0 0.0
  %1827 = vmatprep.subr.mxu0 0.0
  %1828 = vmatpush1.msra.mxu0 0.0
  %1829 = vmatprep.subr.mxu0 0.0
  %1830 = vmatpush1.msra.mxu0 0.0
  %1831 = vmatprep.subr.mxu0 0.0
  %1832 = vmatpush1.msra.mxu0 0.0
  %1833 = vmatprep.subr.mxu0 0.0
  %1834 = vmatpush1.msra.mxu0 0.0
  %1835 = vmatprep.subr.mxu0 0.0
  %1836 = vmatpush1.msra.mxu0 0.0
  %1837 = vmatprep.subr.mxu0 0.0
  %1838 = vmatpush1.msra.mxu0 0.0
  %1839 = vmatprep.subr.mxu0 0.0
  %1840 = vmatpush1.msra.mxu0 0.0
  %1841 = vmatprep.subr.mxu0 0.0
  %1842 = vmatpush1.msra.mxu0 0.0
  %1843 = vmatprep.subr.mxu0 0.0
  %1844 = vmatpush1.msra.mxu0 0.0
  %1845 = vmatprep.subr.mxu0 0.0
  %1846 = vmatpush1.msra.mxu0 0.0
  %1847 = vmatprep.subr.mxu0 0.0
  %1848 = vmatpush1.msra.mxu0 0.0
  %1849 = vmatprep.subr.mxu0 0.0
  %1850 = vmatpush1.msra.mxu0 0.0
  %1851 = vmatprep.subr.mxu0 0.0
  %1852 = vmatpush1.msra.mxu0 0.0
  %1853 = vmatprep.subr.mxu0 0.0
  %1854 = vmatpush1.msra.mxu0 0.0
  %1855 = vmatprep.subr.mxu0 0.0
  %1856 = vmatpush1.msra.mxu0 0.0
  %1857 = vmatprep.subr.mxu0 0.0
  %1858 = vmatpush1.msra.mxu0 0.0
  %1859 = vmatprep.subr.mxu0 0.0
  %1860 = vmatpush1.msra.mxu0 0.0
  %1861 = vmatprep.subr.mxu0 0.0
  %1862 = vmatpush1.msra.mxu0 0.0
  %1863 = vmatprep.subr.mxu0 0.0
  %1864 = vmatpush1.msra.mxu0 0.0
  %1865 = vmatprep.subr.mxu0 0.0
  %1866 = vmatpush1.msra.mxu0 0.0
  %1867 = vmatprep.subr.mxu0 0.0
  %1868 = vmatpush1.msra.mxu0 0.0
  %1869 = vmatprep.subr.mxu0 0.0
  %1870 = vmatpush1.msra.mxu0 0.0
  %1871 = vmatprep.subr.mxu0 0.0
  %1872 = vmatpush1.msra.mxu0 0.0
  %1873 = vmatprep.subr.mxu0 0.0
  %1874 = vmatpush1.msra.mxu0 0.0
  %1875 = vmatprep.subr.mxu0 0.0
  %1876 = vmatpush1.msra.mxu0 0.0
  %1877 = vmatprep.subr.mxu0 0.0
  %1878 = vmatpush1.msra.mxu0 0.0
  %1879 = vmatprep.subr.mxu0 0.0
  %1880 = vmatpush1.msra.mxu0 0.0
  %1881 = vmatprep.mubr.f32.mxu0 0.0
  %1882 = vmatmul.mubr.f32.gmra.mrb[0].mxu0 %v1815
  %v1883 = vpop.f32.mrb[0].mxu0
  %v1884 = vadd.f32 %v1813, %v1883
  %v1885 = vpop.f32.mrb[0].mxu0
  %1886 = vdwg.mxu0
  %v1887 = vmax.f32 %v1884, 0.0
  %v1888 = vld [vmem:[%s1 + $0x48] sm:$0xff]
  %v1889 = vld [vmem:[%s1 + $0x50] sm:$0xff]
  %v1890 = vld [vmem:[%s1 + $0x58] sm:$0xff]
  %v1891 = vld [vmem:[%s1 + $0x60] sm:$0xff]
  %v1892 = vld [vmem:[%s1 + $0x6a] sm:$0x1]
  %v1893 = vlaneseq
  %v1894 = vshrl.u32 %v1893, 7
  %v1895 = vsub.s32 0, %v1894
  %v1896 = vrot.slane %v1892, %v1895
  %v1898 = vsel %vm494, %v1887, 0
  %1900 = vmatprep.subr.mxu0 0.0
  %1901 = vmatpush1.msra.mxu0 %v1888
  %1902 = vmatprep.subr.mxu0 0.0
  %1903 = vmatpush1.msra.mxu0 %v1889
  %1904 = vmatprep.subr.mxu0 0.0
  %1905 = vmatpush1.msra.mxu0 %v1890
  %1906 = vmatprep.subr.mxu0 0.0
  %1907 = vmatpush1.msra.mxu0 %v1891
  %1908 = vmatprep.subr.mxu0 0.0
  %1909 = vmatpush1.msra.mxu0 0.0
  %1910 = vmatprep.subr.mxu0 0.0
  %1911 = vmatpush1.msra.mxu0 0.0
  %1912 = vmatprep.subr.mxu0 0.0
  %1913 = vmatpush1.msra.mxu0 0.0
  %1914 = vmatprep.subr.mxu0 0.0
  %1915 = vmatpush1.msra.mxu0 0.0
  %1916 = vmatprep.subr.mxu0 0.0
  %1917 = vmatpush1.msra.mxu0 0.0
  %1918 = vmatprep.subr.mxu0 0.0
  %1919 = vmatpush1.msra.mxu0 0.0
  %1920 = vmatprep.subr.mxu0 0.0
  %1921 = vmatpush1.msra.mxu0 0.0
  %1922 = vmatprep.subr.mxu0 0.0
  %1923 = vmatpush1.msra.mxu0 0.0
  %1924 = vmatprep.subr.mxu0 0.0
  %1925 = vmatpush1.msra.mxu0 0.0
  %1926 = vmatprep.subr.mxu0 0.0
  %1927 = vmatpush1.msra.mxu0 0.0
  %1928 = vmatprep.subr.mxu0 0.0
  %1929 = vmatpush1.msra.mxu0 0.0
  %1930 = vmatprep.subr.mxu0 0.0
  %1931 = vmatpush1.msra.mxu0 0.0
  %1932 = vmatprep.subr.mxu0 0.0
  %1933 = vmatpush1.msra.mxu0 0.0
  %1934 = vmatprep.subr.mxu0 0.0
  %1935 = vmatpush1.msra.mxu0 0.0
  %1936 = vmatprep.subr.mxu0 0.0
  %1937 = vmatpush1.msra.mxu0 0.0
  %1938 = vmatprep.subr.mxu0 0.0
  %1939 = vmatpush1.msra.mxu0 0.0
  %1940 = vmatprep.subr.mxu0 0.0
  %1941 = vmatpush1.msra.mxu0 0.0
  %1942 = vmatprep.subr.mxu0 0.0
  %1943 = vmatpush1.msra.mxu0 0.0
  %1944 = vmatprep.subr.mxu0 0.0
  %1945 = vmatpush1.msra.mxu0 0.0
  %1946 = vmatprep.subr.mxu0 0.0
  %1947 = vmatpush1.msra.mxu0 0.0
  %1948 = vmatprep.subr.mxu0 0.0
  %1949 = vmatpush1.msra.mxu0 0.0
  %1950 = vmatprep.subr.mxu0 0.0
  %1951 = vmatpush1.msra.mxu0 0.0
  %1952 = vmatprep.subr.mxu0 0.0
  %1953 = vmatpush1.msra.mxu0 0.0
  %1954 = vmatprep.subr.mxu0 0.0
  %1955 = vmatpush1.msra.mxu0 0.0
  %1956 = vmatprep.subr.mxu0 0.0
  %1957 = vmatpush1.msra.mxu0 0.0
  %1958 = vmatprep.subr.mxu0 0.0
  %1959 = vmatpush1.msra.mxu0 0.0
  %1960 = vmatprep.subr.mxu0 0.0
  %1961 = vmatpush1.msra.mxu0 0.0
  %1962 = vmatprep.subr.mxu0 0.0
  %1963 = vmatpush1.msra.mxu0 0.0
  %1964 = vmatprep.mubr.f32.mxu0 0.0
  %1965 = vmatmul.mubr.f32.gmra.mrb[0].mxu0 %v1898
  %v1966 = vpop.f32.mrb[0].mxu0
  %v1967 = vadd.f32 %v1896, %v1966
  %v1968 = vpop.f32.mrb[0].mxu0
  %1969 = vdwg.mxu0
  %v1970 = vmul.f32 %v1967, %v1967
  %1972 = vrot.lane.b32.xlu0 %v1970, 116
  %v1973 = vpop.permute.xlu0 %1972
  %vm1975 = vcmask 25600
  %v1976 = vsel %vm1975, %v1973, 0.0
  %1977 = vadd.xlane.f32.xlu0 %v1976
  %v1978 = vpop.xlane.xlu0 %1977
  %v1979 = vadd.f32 %v1978, 1e-12
  %v1980 = vrsqrt.pop %v1979
  %vm1981 = vcmask 91136
  %1982 = vst.msk [vmem:[%s2] sm:$0x3] %vm1981, %v1967
  %v1983 = vmul.f32 %v1967, %v1980
  %vm1984 = vcmask 124000
  %1985 = vst.msk [vmem:[%s2] sm:$0x3] %vm1984, %v1983
  // Predicated region
  $region10: #{sdf_pose_net_forward.1} parent=0 // pred_check
    _
  $region11: #{sdf_pose_net_forward.1} parent=0 // pred_check_branch
    %1987 = sbr.rel (0) target = $region13
  $region12: #{sdf_pose_net_forward.1} parent=0 // pred_region
    _
  $region13: #{sdf_pose_net_forward.1} parent=0 // pred_fallthru
    _
  // Predicated region
  $region14: #{sdf_pose_net_forward.1} parent=0 // pred_check
    _
  $region15: #{sdf_pose_net_forward.1} parent=0 // pred_check_branch
    %1989 = sbr.rel (0) target = $region17
  $region16: #{sdf_pose_net_forward.1} parent=0 // pred_region
    _
  $region17: #{sdf_pose_net_forward.1} parent=0 // pred_fallthru
    _

</llo_original>
